<compile_context>
chip_gen: v6e
topology: v6e:2x2x1
jax: 0.10.0
libtpu: 0.0.40
codegen_flags: <defaults>
</compile_context>

<pallas_src>
import functools

import jax
import jax.numpy as jnp
from jax.experimental import pallas as pl
from jax.experimental.pallas import tpu as pltpu


def _pad_to_multiple(n, m=128):
    return ((n + m - 1) // m) * m


# ----------------------------------------------------------------------------
# Kernel: one grid step = (one batch element, one transformer layer)
# ----------------------------------------------------------------------------
def gpt_kernel(
    x_ref,        # (1, T, DP)   padded embeddings (f32)
    wqkv_ref,     # (1, DP, 3D)  fused q|k|v projection (bf16)
    wo_ref,       # (1, D, DP)   out projection (bf16)
    bo_ref,       # (1, 1, DP)   out projection bias (f32)
    w1_ref,       # (1, DP, D4P) FFN up (bf16)
    b1_ref,       # (1, 1, D4P)
    w2_ref,       # (1, D4P, DP) FFN down (bf16)
    b2_ref,       # (1, 1, DP)
    g1_ref, s1_ref,   # (1, 1, DP) norm1 scale/shift (f32)
    g2_ref, s2_ref,   # (1, 1, DP) norm2 scale/shift (f32)
    gf_ref, sf_ref,   # (1, DP)    final norm scale/shift (f32)
    wout_ref,     # (DP, VP)     LM head (bf16)
    logits_ref,   # (1, T, VP)   output
    acc_ref,      # (T, DP)      VMEM scratch: activation resident across layers
    *,
    num_heads,
    emb_dim,
):
    layer = pl.program_id(1)
    n_layers = pl.num_programs(1)
    D = emb_dim
    H = num_heads
    Dh = D // H
    T, DP = acc_ref.shape

    # Mask of "real" (unpadded) feature columns for LayerNorm statistics.
    col = jax.lax.broadcasted_iota(jnp.int32, (1, DP), 1)
    colmask = (col < D).astype(jnp.float32)

    def layernorm(v, g, s):
        # v's padded columns are always exactly 0, so sum over DP == sum over D.
        mean = jnp.sum(v, axis=-1, keepdims=True) * (1.0 / D)
        xc = (v - mean) * colmask
        var = jnp.sum(xc * xc, axis=-1, keepdims=True) * (1.0 / D)
        # g/s are zero in padded columns -> output padding stays exactly 0.
        return g * (xc * jax.lax.rsqrt(var + 1e-8)) + s

    def mxu(a, b, dims=None):
        # bf16 operands, f32 accumulation on the MXU.
        a16 = a.astype(jnp.bfloat16)
        b16 = b.astype(jnp.bfloat16)
        if dims is None:
            return jnp.dot(a16, b16, preferred_element_type=jnp.float32)
        return jax.lax.dot_general(a16, b16, dimension_numbers=dims,
                                   preferred_element_type=jnp.float32)

    # Load the padded embedding activations into the resident scratch at the
    # first layer of each batch element.
    @pl.when(layer == 0)
    def _():
        acc_ref[...] = x_ref[0]

    x = acc_ref[...]                                  # (T, DP) f32

    # ---- attention sublayer -------------------------------------------------
    h = layernorm(x, g1_ref[0], s1_ref[0])            # (T, DP)
    qkv = mxu(h, wqkv_ref[0])                         # (T, 3D), fused projection

    row_i = jax.lax.broadcasted_iota(jnp.int32, (T, T), 0)
    col_i = jax.lax.broadcasted_iota(jnp.int32, (T, T), 1)
    causal = col_i <= row_i                           # built once per layer
    neg_big = jnp.float32(-1e30)                      # finite (avoids inf-inf NaN)
    scale = 1.0 / float(Dh) ** 0.5

    ctx_parts = []
    for hi in range(H):                               # H is small & static
        q = qkv[:, hi * Dh:(hi + 1) * Dh]             # (T, Dh)
        k = qkv[:, D + hi * Dh:D + (hi + 1) * Dh]
        v = qkv[:, 2 * D + hi * Dh:2 * D + (hi + 1) * Dh]
        s = mxu(q, k, dims=(((1,), (1,)), ((), ()))) * scale     # (T, T)
        s = jnp.where(causal, s, neg_big)
        m = jnp.max(s, axis=-1, keepdims=True)
        p = jnp.exp(s - m)
        p = p * pl.reciprocal(jnp.sum(p, axis=-1, keepdims=True), approx=True)
        ctx_parts.append(mxu(p, v))                   # (T, Dh)
    ctx = jnp.concatenate(ctx_parts, axis=-1)         # (T, D)

    attn = mxu(ctx, wo_ref[0]) + bo_ref[0]            # (T, DP); padded cols = 0
    x = x + attn                                      # dropout: identity (eval)

    # ---- feed-forward sublayer ----------------------------------------------
    h2 = layernorm(x, g2_ref[0], s2_ref[0])
    hid = mxu(h2, w1_ref[0]) + b1_ref[0]              # (T, D4P), lane-dense
    hid = 0.5 * hid * (1.0 + jnp.tanh(
        jnp.float32((2.0 / jnp.pi) ** 0.5) * (hid + 0.044715 * hid ** 3)))
    x = x + mxu(hid, w2_ref[0]) + b2_ref[0]           # dropout: identity (eval)

    acc_ref[...] = x                                  # stays resident in VMEM

    # ---- final LayerNorm + LM head on the last layer -------------------------
    @pl.when(layer == n_layers - 1)
    def _():
        hf = layernorm(x, gf_ref[...], sf_ref[...])
        logits_ref[0] = mxu(hf, wout_ref[...])        # (T, VP), lane-dense store


# ----------------------------------------------------------------------------
# Wrapper
# ----------------------------------------------------------------------------
def gpt_forward(packed, input_ids, cfg):
    B, T = input_ids.shape
    D = cfg["emb_dim"]
    V = cfg["vocab_size"]
    H = cfg["n_heads"]
    L = cfg["n_layers"]
    DP = packed["w_qkv"].shape[1]
    VP = packed["w_out"].shape[1]

    # Embedding gather + positional add stays in plain JAX (glue); activations
    # are zero-padded on the lane dim so every kernel tile is 128-lane dense.
    tok = jnp.take(packed["tok_emb"], input_ids, axis=0)      # (B, T, D)
    pos = packed["pos_emb"][:T][None, :, :]                   # (1, T, D)
    x = (tok + pos).astype(jnp.float32)
    x = jnp.pad(x, ((0, 0), (0, 0), (0, DP - D)))             # (B, T, DP)

    kernel = functools.partial(gpt_kernel, num_heads=H, emb_dim=D)

    def layer_spec(arr):
        # stacked per-layer array (L, ...): one layer slice per grid step
        block = (1,) + tuple(arr.shape[1:])
        zeros = (0,) * (arr.ndim - 1)
        return pl.BlockSpec(block, lambda b, l, _z=zeros: (l,) + _z)

    def const_spec(arr):
        zeros = (0,) * arr.ndim
        return pl.BlockSpec(tuple(arr.shape), lambda b, l, _z=zeros: _z)

    in_specs = [pl.BlockSpec((1, T, DP), lambda b, l: (b, 0, 0))]
    in_specs += [layer_spec(packed[n]) for n in
                 ("w_qkv", "wo", "bo", "w1", "b1", "w2", "b2",
                  "g1", "s1", "g2", "s2")]
    in_specs += [const_spec(packed[n]) for n in ("g_f", "s_f", "w_out")]

    grid_spec = pltpu.PrefetchScalarGridSpec(
        num_scalar_prefetch=0,
        grid=(B, L),  # batch: parallel (v7x megacore), layers: sequential
        in_specs=in_specs,
        out_specs=pl.BlockSpec((1, T, VP), lambda b, l: (b, 0, 0)),
        scratch_shapes=[pltpu.VMEM((T, DP), jnp.float32)],  # resident activation
    )

    logits_pad = pl.pallas_call(
        kernel,
        out_shape=jax.ShapeDtypeStruct((B, T, VP), jnp.float32),
        grid_spec=grid_spec,
        compiler_params=pltpu.CompilerParams(
            dimension_semantics=("parallel", "arbitrary"),
            # Actual footprint here is < 1 MiB (all blocks are tiny); 32 MiB is
            # well under v7x's 64 MiB physical VMEM.  At realistic D / vocab the
            # FFN / LM-head weights would need their own reduction grid axis.
            vmem_limit_bytes=32 * 1024 * 1024),
    )(x, packed["w_qkv"], packed["wo"], packed["bo"],
      packed["w1"], packed["b1"], packed["w2"], packed["b2"],
      packed["g1"], packed["s1"], packed["g2"], packed["s2"],
      packed["g_f"], packed["s_f"], packed["w_out"])

    return logits_pad[:, :, :V]


# ----------------------------------------------------------------------------
# Parameter init (raw, f32, unpadded) + packing (fused / padded / bf16)
# ----------------------------------------------------------------------------
def init_params(key, cfg):
    D = cfg["emb_dim"]
    V = cfg["vocab_size"]
    C = cfg["context_length"]
    L = cfg["n_layers"]
    D4 = 4 * D

    def normal(k, shape, std=0.02):
        return (std * jax.random.normal(k, shape)).astype(jnp.float32)

    keys = jax.random.split(key, 3 + L)
    raw = {
        "tok_emb": normal(keys[0], (V, D)),
        "pos_emb": normal(keys[1], (C, D)),
        "w_out": normal(keys[2], (D, V)),
        "g_f": jnp.ones((D,), jnp.float32),
        "s_f": jnp.zeros((D,), jnp.float32),
        "blocks": [],
    }
    for li in range(L):
        lk = jax.random.split(keys[3 + li], 8)
        raw["blocks"].append({
            "wq": normal(lk[0], (D, D)),
            "wk": normal(lk[1], (D, D)),
            "wv": normal(lk[2], (D, D)),
            "wo": normal(lk[3], (D, D)),
            "bo": normal(lk[4], (D,)),
            "w1": normal(lk[5], (D, D4)),
            "b1": normal(lk[6], (D4,)),
            "w2": normal(lk[7], (D4, D)),
            "b2": jnp.zeros((D,), jnp.float32),
            "g1": jnp.ones((D,), jnp.float32),
            "s1": jnp.zeros((D,), jnp.float32),
            "g2": jnp.ones((D,), jnp.float32),
            "s2": jnp.zeros((D,), jnp.float32),
        })
    return raw


def pack_params(raw, cfg):
    D = cfg["emb_dim"]
    D4 = 4 * D
    DP = _pad_to_multiple(D)
    D4P = _pad_to_multiple(D4)
    VP = _pad_to_multiple(cfg["vocab_size"])

    def pad2(w, rows, cols, dtype=jnp.bfloat16):
        out = jnp.zeros((rows, cols), jnp.float32)
        out = out.at[:w.shape[0], :w.shape[1]].set(w)
        return out.astype(dtype)

    def pad1(v, cols):
        out = jnp.zeros((1, cols), jnp.float32)
        return out.at[0, :v.shape[0]].set(v)

    def stack(fn):
        return jnp.stack([fn(b) for b in raw["blocks"]])

    return {
        "tok_emb": raw["tok_emb"],
        "pos_emb": raw["pos_emb"],
        # fused qkv (D, 3D), zero-padded input rows, bf16, stacked over layers
        "w_qkv": stack(lambda b: pad2(
            jnp.concatenate([b["wq"], b["wk"], b["wv"]], axis=1), DP, 3 * D)),
        "wo":   stack(lambda b: pad2(b["wo"], D, DP)),
        "bo":   stack(lambda b: pad1(b["bo"], DP)),
        "w1":   stack(lambda b: pad2(b["w1"], DP, D4P)),
        "b1":   stack(lambda b: pad1(b["b1"], D4P)),
        "w2":   stack(lambda b: pad2(b["w2"], D4P, DP)),
        "b2":   stack(lambda b: pad1(b["b2"], DP)),
        "g1":   stack(lambda b: pad1(b["g1"], DP)),
        "s1":   stack(lambda b: pad1(b["s1"], DP)),
        "g2":   stack(lambda b: pad1(b["g2"], DP)),
        "s2":   stack(lambda b: pad1(b["s2"], DP)),
        "g_f":  pad1(raw["g_f"], DP),
        "s_f":  pad1(raw["s_f"], DP),
        "w_out": pad2(raw["w_out"], DP, VP),
    }


# ----------------------------------------------------------------------------
# Pure-JAX f32 reference (mirrors the PyTorch module math)
# ----------------------------------------------------------------------------
def gpt_reference(raw, input_ids, cfg):
    def ln(v, g, b):
        m = jnp.mean(v, -1, keepdims=True)
        var = jnp.mean((v - m) ** 2, -1, keepdims=True)
        return g * ((v - m) / jnp.sqrt(var + 1e-8)) + b

    B, T = input_ids.shape
    D = cfg["emb_dim"]
    H = cfg["n_heads"]
    Dh = D // H
    x = jnp.take(raw["tok_emb"], input_ids, 0) + raw["pos_emb"][:T][None]
    causal = jnp.arange(T)[None, :] <= jnp.arange(T)[:, None]
    for blk in raw["blocks"]:
        h = ln(x, blk["g1"], blk["s1"])
        q = (h @ blk["wq"]).reshape(B, T, H, Dh).transpose(0, 2, 1, 3)
        k = (h @ blk["wk"]).reshape(B, T, H, Dh).transpose(0, 2, 1, 3)
        v = (h @ blk["wv"]).reshape(B, T, H, Dh).transpose(0, 2, 1, 3)
        s = jnp.einsum("bhqd,bhkd->bhqk", q, k) / jnp.sqrt(jnp.float32(Dh))
        s = jnp.where(causal[None, None], s, -jnp.inf)
        p = jax.nn.softmax(s, axis=-1)
        ctx = jnp.einsum("bhqk,bhkd->bhqd", p, v).transpose(0, 2, 1, 3).reshape(B, T, D)
        x = x + ctx @ blk["wo"] + blk["bo"]
        h2 = ln(x, blk["g2"], blk["s2"])
        hid = h2 @ blk["w1"] + blk["b1"]
        hid = 0.5 * hid * (1 + jnp.tanh(
            jnp.sqrt(2.0 / jnp.pi) * (hid + 0.044715 * hid ** 3)))
        x = x + hid @ blk["w2"] + blk["b2"]
    h = ln(x, raw["g_f"], raw["s_f"])
    return h @ raw["w_out"]


# ----------------------------------------------------------------------------
if __name__ == "__main__":
    cfg = {
        "vocab_size": 64,
        "context_length": 8,
        "emb_dim": 32,
        "n_heads": 4,
        "n_layers": 2,
        "drop_rate": 0.0,   # dropout is identity in this (eval-mode) kernel
        "qkv_bias": False,
    }
    key = jax.random.PRNGKey(0)
    pkey, ikey = jax.random.split(key)
    raw = init_params(pkey, cfg)
    packed = pack_params(raw, cfg)

    B, T = 2, cfg["context_length"]
    input_ids = jax.random.randint(ikey, (B, T), 0, cfg["vocab_size"], dtype=jnp.int32)

    logits = gpt_forward(packed, input_ids, cfg)
    logits = jax.block_until_ready(logits)

    ref = gpt_reference(raw, input_ids, cfg)
    assert logits.shape == (B, T, cfg["vocab_size"])
    # bf16 matmul operands + approx reciprocal vs f32 reference -> loose tol.
    max_err = float(jnp.max(jnp.abs(logits - ref)))
    assert jnp.allclose(logits, ref, rtol=3e-2, atol=3e-2), (
        "mismatch vs reference: max abs err = %g" % max_err)

    print("KERNEL_OK")
</pallas_src>

<mosaic_0001>
module attributes {stable_mosaic.version = 11 : i64} {
  func.func @gpt_kernel(%arg0: i32, %arg1: i32, %arg2: memref<1x8x128xf32, #tpu.memory_space<vmem>>, %arg3: memref<1x128x96xbf16, #tpu.memory_space<vmem>>, %arg4: memref<1x32x128xbf16, #tpu.memory_space<vmem>>, %arg5: memref<1x1x128xf32, #tpu.memory_space<vmem>>, %arg6: memref<1x128x128xbf16, #tpu.memory_space<vmem>>, %arg7: memref<1x1x128xf32, #tpu.memory_space<vmem>>, %arg8: memref<1x128x128xbf16, #tpu.memory_space<vmem>>, %arg9: memref<1x1x128xf32, #tpu.memory_space<vmem>>, %arg10: memref<1x1x128xf32, #tpu.memory_space<vmem>>, %arg11: memref<1x1x128xf32, #tpu.memory_space<vmem>>, %arg12: memref<1x1x128xf32, #tpu.memory_space<vmem>>, %arg13: memref<1x1x128xf32, #tpu.memory_space<vmem>>, %arg14: memref<1x128xf32, #tpu.memory_space<vmem>>, %arg15: memref<1x128xf32, #tpu.memory_space<vmem>>, %arg16: memref<128x128xbf16, #tpu.memory_space<vmem>>, %arg17: memref<1x8x128xf32, #tpu.memory_space<vmem>>, %arg18: memref<8x128xf32, #tpu.memory_space<vmem>>) attributes {dimension_semantics = [#tpu.dimension_semantics<parallel>, #tpu.dimension_semantics<arbitrary>], iteration_bounds = array<i64: 2, 2>, scalar_prefetch = 0 : i64, scratch_operands = 1 : i64, tpu.core_type = #tpu.core_type<tc>, window_params = [{transform_indices = @transform_0, window_bounds = array<i64: 1, 8, 128>}, {transform_indices = @transform_1, window_bounds = array<i64: 1, 128, 96>}, {transform_indices = @transform_2, window_bounds = array<i64: 1, 32, 128>}, {transform_indices = @transform_3, window_bounds = array<i64: 1, 1, 128>}, {transform_indices = @transform_4, window_bounds = array<i64: 1, 128, 128>}, {transform_indices = @transform_5, window_bounds = array<i64: 1, 1, 128>}, {transform_indices = @transform_6, window_bounds = array<i64: 1, 128, 128>}, {transform_indices = @transform_7, window_bounds = array<i64: 1, 1, 128>}, {transform_indices = @transform_8, window_bounds = array<i64: 1, 1, 128>}, {transform_indices = @transform_9, window_bounds = array<i64: 1, 1, 128>}, {transform_indices = @transform_10, window_bounds = array<i64: 1, 1, 128>}, {transform_indices = @transform_11, window_bounds = array<i64: 1, 1, 128>}, {pipeline_mode = #tpu.pipeline_mode<synchronous>, transform_indices = @transform_12, window_bounds = array<i64: 1, 128>}, {pipeline_mode = #tpu.pipeline_mode<synchronous>, transform_indices = @transform_13, window_bounds = array<i64: 1, 128>}, {pipeline_mode = #tpu.pipeline_mode<synchronous>, transform_indices = @transform_14, window_bounds = array<i64: 128, 128>}, {transform_indices = @transform_15, window_bounds = array<i64: 1, 8, 128>}]} {
    %0 = tpu.iota {dimensions = array<i32: 1>} : vector<1x128xi32>
    %c32_i32 = arith.constant 32 : i32
    %1 = vector.broadcast %c32_i32 : i32 to vector<1x128xi32>
    %2 = arith.cmpi slt, %0, %1 : vector<1x128xi32>
    %3 = arith.extui %2 : vector<1x128xi1> to vector<1x128xi32>
    %4 = arith.sitofp %3 : vector<1x128xi32> to vector<1x128xf32>
    %c0_i32 = arith.constant 0 : i32
    %5 = arith.cmpi eq, %arg1, %c0_i32 : i32
    %6 = arith.extui %5 : i1 to i32
    %c0_i32_0 = arith.constant 0 : i32
    %7 = arith.cmpi ne, %6, %c0_i32_0 : i32
    scf.if %7 {
      %c0_79 = arith.constant 0 : index
      %c0_80 = arith.constant 0 : index
      %c0_81 = arith.constant 0 : index
      %204 = vector.load %arg2[%c0_79, %c0_80, %c0_81] : memref<1x8x128xf32, #tpu.memory_space<vmem>>, vector<1x8x128xf32>
      %205 = vector.shape_cast %204 : vector<1x8x128xf32> to vector<8x128xf32>
      %c0_82 = arith.constant 0 : index
      %c0_83 = arith.constant 0 : index
      %206 = vector.load %arg18[%c0_82, %c0_83] : memref<8x128xf32, #tpu.memory_space<vmem>>, vector<8x128xf32>
      tpu.vector_store %arg18[%c0_82, %c0_83], %205 {strides = array<i32>} : memref<8x128xf32, #tpu.memory_space<vmem>>, vector<8x128xf32>,
    } else {
    }
    %c0 = arith.constant 0 : index
    %c0_1 = arith.constant 0 : index
    %8 = vector.load %arg18[%c0, %c0_1] : memref<8x128xf32, #tpu.memory_space<vmem>>, vector<8x128xf32>
    %c0_2 = arith.constant 0 : index
    %c0_3 = arith.constant 0 : index
    %c0_4 = arith.constant 0 : index
    %9 = vector.load %arg10[%c0_2, %c0_3, %c0_4] : memref<1x1x128xf32, #tpu.memory_space<vmem>>, vector<1x1x128xf32>
    %10 = vector.shape_cast %9 : vector<1x1x128xf32> to vector<1x128xf32>
    %c0_5 = arith.constant 0 : index
    %c0_6 = arith.constant 0 : index
    %c0_7 = arith.constant 0 : index
    %11 = vector.load %arg11[%c0_5, %c0_6, %c0_7] : memref<1x1x128xf32, #tpu.memory_space<vmem>>, vector<1x1x128xf32>
    %12 = vector.shape_cast %11 : vector<1x1x128xf32> to vector<1x128xf32>
    %cst = arith.constant dense<0.000000e+00> : vector<8xf32>
    %13 = vector.multi_reduction <add>, %8, %cst [1] : vector<8x128xf32> to vector<8xf32>
    %14 = vector.shape_cast %13 : vector<8xf32> to vector<8x1xf32>
    %cst_8 = arith.constant 3.125000e-02 : f32
    %15 = vector.broadcast %cst_8 : f32 to vector<8x1xf32>
    %16 = arith.mulf %14, %15 : vector<8x1xf32>
    %17 = vector.broadcast %16 : vector<8x1xf32> to vector<8x128xf32>
    %18 = arith.subf %8, %17 : vector<8x128xf32>
    %19 = vector.broadcast %4 : vector<1x128xf32> to vector<8x128xf32>
    %20 = arith.mulf %18, %19 : vector<8x128xf32>
    %21 = arith.mulf %20, %20 : vector<8x128xf32>
    %cst_9 = arith.constant dense<0.000000e+00> : vector<8xf32>
    %22 = vector.multi_reduction <add>, %21, %cst_9 [1] : vector<8x128xf32> to vector<8xf32>
    %23 = vector.shape_cast %22 : vector<8xf32> to vector<8x1xf32>
    %cst_10 = arith.constant 3.125000e-02 : f32
    %24 = vector.broadcast %cst_10 : f32 to vector<8x1xf32>
    %25 = arith.mulf %23, %24 : vector<8x1xf32>
    %cst_11 = arith.constant 9.99999993E-9 : f32
    %26 = vector.broadcast %cst_11 : f32 to vector<8x1xf32>
    %27 = arith.addf %25, %26 : vector<8x1xf32>
    %28 = math.rsqrt %27 : vector<8x1xf32>
    %29 = vector.broadcast %28 : vector<8x1xf32> to vector<8x128xf32>
    %30 = arith.mulf %20, %29 : vector<8x128xf32>
    %31 = vector.broadcast %10 : vector<1x128xf32> to vector<8x128xf32>
    %32 = arith.mulf %31, %30 : vector<8x128xf32>
    %33 = vector.broadcast %12 : vector<1x128xf32> to vector<8x128xf32>
    %34 = arith.addf %32, %33 : vector<8x128xf32>
    %c0_12 = arith.constant 0 : index
    %c0_13 = arith.constant 0 : index
    %c0_14 = arith.constant 0 : index
    %35 = vector.load %arg3[%c0_12, %c0_13, %c0_14] : memref<1x128x96xbf16, #tpu.memory_space<vmem>>, vector<1x128x96xbf16>
    %36 = vector.shape_cast %35 : vector<1x128x96xbf16> to vector<128x96xbf16>
    %37 = arith.truncf %34 : vector<8x128xf32> to vector<8x128xbf16>
    %cst_15 = arith.constant dense<0.000000e+00> : vector<8x96xf32>
    %38 = tpu.matmul %37, %36, %cst_15 {dimension_numbers = #tpu.dot_dimension_numbers<[1], [0], [0], [1], [0, 0, 1, 1], [], []>} : vector<8x128xbf16>, vector<128x96xbf16>, vector<8x96xf32> -> vector<8x96xf32>
    %39 = tpu.iota {dimensions = array<i32: 0>} : vector<8x8xi32>
    %40 = tpu.iota {dimensions = array<i32: 1>} : vector<8x8xi32>
    %41 = arith.cmpi sle, %40, %39 : vector<8x8xi32>
    %42 = vector.extract_strided_slice %38 {offsets = [0, 0], sizes = [8, 8], strides = [1, 1]} : vector<8x96xf32> to vector<8x8xf32>
    %43 = vector.extract_strided_slice %38 {offsets = [0, 32], sizes = [8, 8], strides = [1, 1]} : vector<8x96xf32> to vector<8x8xf32>
    %44 = vector.extract_strided_slice %38 {offsets = [0, 64], sizes = [8, 8], strides = [1, 1]} : vector<8x96xf32> to vector<8x8xf32>
    %45 = arith.truncf %42 : vector<8x8xf32> to vector<8x8xbf16>
    %46 = arith.truncf %43 : vector<8x8xf32> to vector<8x8xbf16>
    %cst_16 = arith.constant dense<0.000000e+00> : vector<8x8xf32>
    %47 = tpu.matmul %45, %46, %cst_16 {dimension_numbers = #tpu.dot_dimension_numbers<[1], [1], [0], [0], [0, 0, 1, 0], [], []>} : vector<8x8xbf16>, vector<8x8xbf16>, vector<8x8xf32> -> vector<8x8xf32>
    %cst_17 = arith.constant 0.353553385 : f32
    %48 = vector.broadcast %cst_17 : f32 to vector<8x8xf32>
    %49 = arith.mulf %47, %48 : vector<8x8xf32>
    %cst_18 = arith.constant -1.000000e+30 : f32
    %50 = vector.broadcast %cst_18 : f32 to vector<8x8xf32>
    %51 = arith.select %41, %49, %50 : vector<8x8xi1>, vector<8x8xf32>
    %cst_19 = arith.constant dense<0xFF800000> : vector<8xf32>
    %52 = vector.multi_reduction <maximumf>, %51, %cst_19 [1] : vector<8x8xf32> to vector<8xf32>
    %53 = vector.shape_cast %52 : vector<8xf32> to vector<8x1xf32>
    %54 = vector.broadcast %53 : vector<8x1xf32> to vector<8x8xf32>
    %55 = arith.subf %51, %54 : vector<8x8xf32>
    %56 = math.exp %55 : vector<8x8xf32>
    %cst_20 = arith.constant dense<0.000000e+00> : vector<8xf32>
    %57 = vector.multi_reduction <add>, %56, %cst_20 [1] : vector<8x8xf32> to vector<8xf32>
    %58 = vector.shape_cast %57 : vector<8xf32> to vector<8x1xf32>
    %59 = tpu.reciprocal %58 {approx = true} : vector<8x1xf32> -> vector<8x1xf32>
    %60 = vector.broadcast %59 : vector<8x1xf32> to vector<8x8xf32>
    %61 = arith.mulf %56, %60 : vector<8x8xf32>
    %62 = arith.truncf %61 : vector<8x8xf32> to vector<8x8xbf16>
    %63 = arith.truncf %44 : vector<8x8xf32> to vector<8x8xbf16>
    %cst_21 = arith.constant dense<0.000000e+00> : vector<8x8xf32>
    %64 = tpu.matmul %62, %63, %cst_21 {dimension_numbers = #tpu.dot_dimension_numbers<[1], [0], [0], [1], [0, 0, 1, 1], [], []>} : vector<8x8xbf16>, vector<8x8xbf16>, vector<8x8xf32> -> vector<8x8xf32>
    %65 = vector.extract_strided_slice %38 {offsets = [0, 8], sizes = [8, 8], strides = [1, 1]} : vector<8x96xf32> to vector<8x8xf32>
    %66 = vector.extract_strided_slice %38 {offsets = [0, 40], sizes = [8, 8], strides = [1, 1]} : vector<8x96xf32> to vector<8x8xf32>
    %67 = vector.extract_strided_slice %38 {offsets = [0, 72], sizes = [8, 8], strides = [1, 1]} : vector<8x96xf32> to vector<8x8xf32>
    %68 = arith.truncf %65 : vector<8x8xf32> to vector<8x8xbf16>
    %69 = arith.truncf %66 : vector<8x8xf32> to vector<8x8xbf16>
    %cst_22 = arith.constant dense<0.000000e+00> : vector<8x8xf32>
    %70 = tpu.matmul %68, %69, %cst_22 {dimension_numbers = #tpu.dot_dimension_numbers<[1], [1], [0], [0], [0, 0, 1, 0], [], []>} : vector<8x8xbf16>, vector<8x8xbf16>, vector<8x8xf32> -> vector<8x8xf32>
    %cst_23 = arith.constant 0.353553385 : f32
    %71 = vector.broadcast %cst_23 : f32 to vector<8x8xf32>
    %72 = arith.mulf %70, %71 : vector<8x8xf32>
    %cst_24 = arith.constant -1.000000e+30 : f32
    %73 = vector.broadcast %cst_24 : f32 to vector<8x8xf32>
    %74 = arith.select %41, %72, %73 : vector<8x8xi1>, vector<8x8xf32>
    %cst_25 = arith.constant dense<0xFF800000> : vector<8xf32>
    %75 = vector.multi_reduction <maximumf>, %74, %cst_25 [1] : vector<8x8xf32> to vector<8xf32>
    %76 = vector.shape_cast %75 : vector<8xf32> to vector<8x1xf32>
    %77 = vector.broadcast %76 : vector<8x1xf32> to vector<8x8xf32>
    %78 = arith.subf %74, %77 : vector<8x8xf32>
    %79 = math.exp %78 : vector<8x8xf32>
    %cst_26 = arith.constant dense<0.000000e+00> : vector<8xf32>
    %80 = vector.multi_reduction <add>, %79, %cst_26 [1] : vector<8x8xf32> to vector<8xf32>
    %81 = vector.shape_cast %80 : vector<8xf32> to vector<8x1xf32>
    %82 = tpu.reciprocal %81 {approx = true} : vector<8x1xf32> -> vector<8x1xf32>
    %83 = vector.broadcast %82 : vector<8x1xf32> to vector<8x8xf32>
    %84 = arith.mulf %79, %83 : vector<8x8xf32>
    %85 = arith.truncf %84 : vector<8x8xf32> to vector<8x8xbf16>
    %86 = arith.truncf %67 : vector<8x8xf32> to vector<8x8xbf16>
    %cst_27 = arith.constant dense<0.000000e+00> : vector<8x8xf32>
    %87 = tpu.matmul %85, %86, %cst_27 {dimension_numbers = #tpu.dot_dimension_numbers<[1], [0], [0], [1], [0, 0, 1, 1], [], []>} : vector<8x8xbf16>, vector<8x8xbf16>, vector<8x8xf32> -> vector<8x8xf32>
    %88 = vector.extract_strided_slice %38 {offsets = [0, 16], sizes = [8, 8], strides = [1, 1]} : vector<8x96xf32> to vector<8x8xf32>
    %89 = vector.extract_strided_slice %38 {offsets = [0, 48], sizes = [8, 8], strides = [1, 1]} : vector<8x96xf32> to vector<8x8xf32>
    %90 = vector.extract_strided_slice %38 {offsets = [0, 80], sizes = [8, 8], strides = [1, 1]} : vector<8x96xf32> to vector<8x8xf32>
    %91 = arith.truncf %88 : vector<8x8xf32> to vector<8x8xbf16>
    %92 = arith.truncf %89 : vector<8x8xf32> to vector<8x8xbf16>
    %cst_28 = arith.constant dense<0.000000e+00> : vector<8x8xf32>
    %93 = tpu.matmul %91, %92, %cst_28 {dimension_numbers = #tpu.dot_dimension_numbers<[1], [1], [0], [0], [0, 0, 1, 0], [], []>} : vector<8x8xbf16>, vector<8x8xbf16>, vector<8x8xf32> -> vector<8x8xf32>
    %cst_29 = arith.constant 0.353553385 : f32
    %94 = vector.broadcast %cst_29 : f32 to vector<8x8xf32>
    %95 = arith.mulf %93, %94 : vector<8x8xf32>
    %cst_30 = arith.constant -1.000000e+30 : f32
    %96 = vector.broadcast %cst_30 : f32 to vector<8x8xf32>
    %97 = arith.select %41, %95, %96 : vector<8x8xi1>, vector<8x8xf32>
    %cst_31 = arith.constant dense<0xFF800000> : vector<8xf32>
    %98 = vector.multi_reduction <maximumf>, %97, %cst_31 [1] : vector<8x8xf32> to vector<8xf32>
    %99 = vector.shape_cast %98 : vector<8xf32> to vector<8x1xf32>
    %100 = vector.broadcast %99 : vector<8x1xf32> to vector<8x8xf32>
    %101 = arith.subf %97, %100 : vector<8x8xf32>
    %102 = math.exp %101 : vector<8x8xf32>
    %cst_32 = arith.constant dense<0.000000e+00> : vector<8xf32>
    %103 = vector.multi_reduction <add>, %102, %cst_32 [1] : vector<8x8xf32> to vector<8xf32>
    %104 = vector.shape_cast %103 : vector<8xf32> to vector<8x1xf32>
    %105 = tpu.reciprocal %104 {approx = true} : vector<8x1xf32> -> vector<8x1xf32>
    %106 = vector.broadcast %105 : vector<8x1xf32> to vector<8x8xf32>
    %107 = arith.mulf %102, %106 : vector<8x8xf32>
    %108 = arith.truncf %107 : vector<8x8xf32> to vector<8x8xbf16>
    %109 = arith.truncf %90 : vector<8x8xf32> to vector<8x8xbf16>
    %cst_33 = arith.constant dense<0.000000e+00> : vector<8x8xf32>
    %110 = tpu.matmul %108, %109, %cst_33 {dimension_numbers = #tpu.dot_dimension_numbers<[1], [0], [0], [1], [0, 0, 1, 1], [], []>} : vector<8x8xbf16>, vector<8x8xbf16>, vector<8x8xf32> -> vector<8x8xf32>
    %111 = vector.extract_strided_slice %38 {offsets = [0, 24], sizes = [8, 8], strides = [1, 1]} : vector<8x96xf32> to vector<8x8xf32>
    %112 = vector.extract_strided_slice %38 {offsets = [0, 56], sizes = [8, 8], strides = [1, 1]} : vector<8x96xf32> to vector<8x8xf32>
    %113 = vector.extract_strided_slice %38 {offsets = [0, 88], sizes = [8, 8], strides = [1, 1]} : vector<8x96xf32> to vector<8x8xf32>
    %114 = arith.truncf %111 : vector<8x8xf32> to vector<8x8xbf16>
    %115 = arith.truncf %112 : vector<8x8xf32> to vector<8x8xbf16>
    %cst_34 = arith.constant dense<0.000000e+00> : vector<8x8xf32>
    %116 = tpu.matmul %114, %115, %cst_34 {dimension_numbers = #tpu.dot_dimension_numbers<[1], [1], [0], [0], [0, 0, 1, 0], [], []>} : vector<8x8xbf16>, vector<8x8xbf16>, vector<8x8xf32> -> vector<8x8xf32>
    %cst_35 = arith.constant 0.353553385 : f32
    %117 = vector.broadcast %cst_35 : f32 to vector<8x8xf32>
    %118 = arith.mulf %116, %117 : vector<8x8xf32>
    %cst_36 = arith.constant -1.000000e+30 : f32
    %119 = vector.broadcast %cst_36 : f32 to vector<8x8xf32>
    %120 = arith.select %41, %118, %119 : vector<8x8xi1>, vector<8x8xf32>
    %cst_37 = arith.constant dense<0xFF800000> : vector<8xf32>
    %121 = vector.multi_reduction <maximumf>, %120, %cst_37 [1] : vector<8x8xf32> to vector<8xf32>
    %122 = vector.shape_cast %121 : vector<8xf32> to vector<8x1xf32>
    %123 = vector.broadcast %122 : vector<8x1xf32> to vector<8x8xf32>
    %124 = arith.subf %120, %123 : vector<8x8xf32>
    %125 = math.exp %124 : vector<8x8xf32>
    %cst_38 = arith.constant dense<0.000000e+00> : vector<8xf32>
    %126 = vector.multi_reduction <add>, %125, %cst_38 [1] : vector<8x8xf32> to vector<8xf32>
    %127 = vector.shape_cast %126 : vector<8xf32> to vector<8x1xf32>
    %128 = tpu.reciprocal %127 {approx = true} : vector<8x1xf32> -> vector<8x1xf32>
    %129 = vector.broadcast %128 : vector<8x1xf32> to vector<8x8xf32>
    %130 = arith.mulf %125, %129 : vector<8x8xf32>
    %131 = arith.truncf %130 : vector<8x8xf32> to vector<8x8xbf16>
    %132 = arith.truncf %113 : vector<8x8xf32> to vector<8x8xbf16>
    %cst_39 = arith.constant dense<0.000000e+00> : vector<8x8xf32>
    %133 = tpu.matmul %131, %132, %cst_39 {dimension_numbers = #tpu.dot_dimension_numbers<[1], [0], [0], [1], [0, 0, 1, 1], [], []>} : vector<8x8xbf16>, vector<8x8xbf16>, vector<8x8xf32> -> vector<8x8xf32>
    %134 = tpu.concatenate %64, %87, %110, %133 in 1 : vector<8x8xf32>, vector<8x8xf32>, vector<8x8xf32>, vector<8x8xf32> -> vector<8x32xf32>
    %c0_40 = arith.constant 0 : index
    %c0_41 = arith.constant 0 : index
    %c0_42 = arith.constant 0 : index
    %135 = vector.load %arg4[%c0_40, %c0_41, %c0_42] : memref<1x32x128xbf16, #tpu.memory_space<vmem>>, vector<1x32x128xbf16>
    %136 = vector.shape_cast %135 : vector<1x32x128xbf16> to vector<32x128xbf16>
    %137 = arith.truncf %134 : vector<8x32xf32> to vector<8x32xbf16>
    %cst_43 = arith.constant dense<0.000000e+00> : vector<8x128xf32>
    %138 = tpu.matmul %137, %136, %cst_43 {dimension_numbers = #tpu.dot_dimension_numbers<[1], [0], [0], [1], [0, 0, 1, 1], [], []>} : vector<8x32xbf16>, vector<32x128xbf16>, vector<8x128xf32> -> vector<8x128xf32>
    %c0_44 = arith.constant 0 : index
    %c0_45 = arith.constant 0 : index
    %c0_46 = arith.constant 0 : index
    %139 = vector.load %arg5[%c0_44, %c0_45, %c0_46] : memref<1x1x128xf32, #tpu.memory_space<vmem>>, vector<1x1x128xf32>
    %140 = vector.shape_cast %139 : vector<1x1x128xf32> to vector<1x128xf32>
    %141 = vector.broadcast %140 : vector<1x128xf32> to vector<8x128xf32>
    %142 = arith.addf %138, %141 : vector<8x128xf32>
    %143 = arith.addf %8, %142 : vector<8x128xf32>
    %c0_47 = arith.constant 0 : index
    %c0_48 = arith.constant 0 : index
    %c0_49 = arith.constant 0 : index
    %144 = vector.load %arg12[%c0_47, %c0_48, %c0_49] : memref<1x1x128xf32, #tpu.memory_space<vmem>>, vector<1x1x128xf32>
    %145 = vector.shape_cast %144 : vector<1x1x128xf32> to vector<1x128xf32>
    %c0_50 = arith.constant 0 : index
    %c0_51 = arith.constant 0 : index
    %c0_52 = arith.constant 0 : index
    %146 = vector.load %arg13[%c0_50, %c0_51, %c0_52] : memref<1x1x128xf32, #tpu.memory_space<vmem>>, vector<1x1x128xf32>
    %147 = vector.shape_cast %146 : vector<1x1x128xf32> to vector<1x128xf32>
    %cst_53 = arith.constant dense<0.000000e+00> : vector<8xf32>
    %148 = vector.multi_reduction <add>, %143, %cst_53 [1] : vector<8x128xf32> to vector<8xf32>
    %149 = vector.shape_cast %148 : vector<8xf32> to vector<8x1xf32>
    %cst_54 = arith.constant 3.125000e-02 : f32
    %150 = vector.broadcast %cst_54 : f32 to vector<8x1xf32>
    %151 = arith.mulf %149, %150 : vector<8x1xf32>
    %152 = vector.broadcast %151 : vector<8x1xf32> to vector<8x128xf32>
    %153 = arith.subf %143, %152 : vector<8x128xf32>
    %154 = vector.broadcast %4 : vector<1x128xf32> to vector<8x128xf32>
    %155 = arith.mulf %153, %154 : vector<8x128xf32>
    %156 = arith.mulf %155, %155 : vector<8x128xf32>
    %cst_55 = arith.constant dense<0.000000e+00> : vector<8xf32>
    %157 = vector.multi_reduction <add>, %156, %cst_55 [1] : vector<8x128xf32> to vector<8xf32>
    %158 = vector.shape_cast %157 : vector<8xf32> to vector<8x1xf32>
    %cst_56 = arith.constant 3.125000e-02 : f32
    %159 = vector.broadcast %cst_56 : f32 to vector<8x1xf32>
    %160 = arith.mulf %158, %159 : vector<8x1xf32>
    %cst_57 = arith.constant 9.99999993E-9 : f32
    %161 = vector.broadcast %cst_57 : f32 to vector<8x1xf32>
    %162 = arith.addf %160, %161 : vector<8x1xf32>
    %163 = math.rsqrt %162 : vector<8x1xf32>
    %164 = vector.broadcast %163 : vector<8x1xf32> to vector<8x128xf32>
    %165 = arith.mulf %155, %164 : vector<8x128xf32>
    %166 = vector.broadcast %145 : vector<1x128xf32> to vector<8x128xf32>
    %167 = arith.mulf %166, %165 : vector<8x128xf32>
    %168 = vector.broadcast %147 : vector<1x128xf32> to vector<8x128xf32>
    %169 = arith.addf %167, %168 : vector<8x128xf32>
    %c0_58 = arith.constant 0 : index
    %c0_59 = arith.constant 0 : index
    %c0_60 = arith.constant 0 : index
    %170 = vector.load %arg6[%c0_58, %c0_59, %c0_60] : memref<1x128x128xbf16, #tpu.memory_space<vmem>>, vector<1x128x128xbf16>
    %171 = vector.shape_cast %170 : vector<1x128x128xbf16> to vector<128x128xbf16>
    %172 = arith.truncf %169 : vector<8x128xf32> to vector<8x128xbf16>
    %cst_61 = arith.constant dense<0.000000e+00> : vector<8x128xf32>
    %173 = tpu.matmul %172, %171, %cst_61 {dimension_numbers = #tpu.dot_dimension_numbers<[1], [0], [0], [1], [0, 0, 1, 1], [], []>} : vector<8x128xbf16>, vector<128x128xbf16>, vector<8x128xf32> -> vector<8x128xf32>
    %c0_62 = arith.constant 0 : index
    %c0_63 = arith.constant 0 : index
    %c0_64 = arith.constant 0 : index
    %174 = vector.load %arg7[%c0_62, %c0_63, %c0_64] : memref<1x1x128xf32, #tpu.memory_space<vmem>>, vector<1x1x128xf32>
    %175 = vector.shape_cast %174 : vector<1x1x128xf32> to vector<1x128xf32>
    %176 = vector.broadcast %175 : vector<1x128xf32> to vector<8x128xf32>
    %177 = arith.addf %173, %176 : vector<8x128xf32>
    %cst_65 = arith.constant 5.000000e-01 : f32
    %178 = vector.broadcast %cst_65 : f32 to vector<8x128xf32>
    %179 = arith.mulf %178, %177 : vector<8x128xf32>
    %180 = arith.mulf %177, %177 : vector<8x128xf32>
    %181 = arith.mulf %177, %180 : vector<8x128xf32>
    %cst_66 = arith.constant 4.471500e-02 : f32
    %182 = vector.broadcast %cst_66 : f32 to vector<8x128xf32>
    %183 = arith.mulf %182, %181 : vector<8x128xf32>
    %184 = arith.addf %177, %183 : vector<8x128xf32>
    %cst_67 = arith.constant 0.797884583 : f32
    %185 = vector.broadcast %cst_67 : f32 to vector<8x128xf32>
    %186 = arith.mulf %185, %184 : vector<8x128xf32>
    %187 = math.tanh %186 : vector<8x128xf32>
    %cst_68 = arith.constant 1.000000e+00 : f32
    %188 = vector.broadcast %cst_68 : f32 to vector<8x128xf32>
    %189 = arith.addf %188, %187 : vector<8x128xf32>
    %190 = arith.mulf %179, %189 : vector<8x128xf32>
    %c0_69 = arith.constant 0 : index
    %c0_70 = arith.constant 0 : index
    %c0_71 = arith.constant 0 : index
    %191 = vector.load %arg8[%c0_69, %c0_70, %c0_71] : memref<1x128x128xbf16, #tpu.memory_space<vmem>>, vector<1x128x128xbf16>
    %192 = vector.shape_cast %191 : vector<1x128x128xbf16> to vector<128x128xbf16>
    %193 = arith.truncf %190 : vector<8x128xf32> to vector<8x128xbf16>
    %cst_72 = arith.constant dense<0.000000e+00> : vector<8x128xf32>
    %194 = tpu.matmul %193, %192, %cst_72 {dimension_numbers = #tpu.dot_dimension_numbers<[1], [0], [0], [1], [0, 0, 1, 1], [], []>} : vector<8x128xbf16>, vector<128x128xbf16>, vector<8x128xf32> -> vector<8x128xf32>
    %195 = arith.addf %143, %194 : vector<8x128xf32>
    %c0_73 = arith.constant 0 : index
    %c0_74 = arith.constant 0 : index
    %c0_75 = arith.constant 0 : index
    %196 = vector.load %arg9[%c0_73, %c0_74, %c0_75] : memref<1x1x128xf32, #tpu.memory_space<vmem>>, vector<1x1x128xf32>
    %197 = vector.shape_cast %196 : vector<1x1x128xf32> to vector<1x128xf32>
    %198 = vector.broadcast %197 : vector<1x128xf32> to vector<8x128xf32>
    %199 = arith.addf %195, %198 : vector<8x128xf32>
    %c0_76 = arith.constant 0 : index
    %c0_77 = arith.constant 0 : index
    %200 = vector.load %arg18[%c0_76, %c0_77] : memref<8x128xf32, #tpu.memory_space<vmem>>, vector<8x128xf32>
    tpu.vector_store %arg18[%c0_76, %c0_77], %199 {strides = array<i32>} : memref<8x128xf32, #tpu.memory_space<vmem>>, vector<8x128xf32>,
    %c1_i32 = arith.constant 1 : i32
    %201 = arith.cmpi eq, %arg1, %c1_i32 : i32
    %202 = arith.extui %201 : i1 to i32
    %c0_i32_78 = arith.constant 0 : i32
    %203 = arith.cmpi ne, %202, %c0_i32_78 : i32
    scf.if %203 {
      %c0_79 = arith.constant 0 : index
      %c0_80 = arith.constant 0 : index
      %204 = vector.load %arg14[%c0_79, %c0_80] : memref<1x128xf32, #tpu.memory_space<vmem>>, vector<1x128xf32>
      %c0_81 = arith.constant 0 : index
      %c0_82 = arith.constant 0 : index
      %205 = vector.load %arg15[%c0_81, %c0_82] : memref<1x128xf32, #tpu.memory_space<vmem>>, vector<1x128xf32>
      %cst_83 = arith.constant dense<0.000000e+00> : vector<8xf32>
      %206 = vector.multi_reduction <add>, %199, %cst_83 [1] : vector<8x128xf32> to vector<8xf32>
      %207 = vector.shape_cast %206 : vector<8xf32> to vector<8x1xf32>
      %cst_84 = arith.constant 3.125000e-02 : f32
      %208 = vector.broadcast %cst_84 : f32 to vector<8x1xf32>
      %209 = arith.mulf %207, %208 : vector<8x1xf32>
      %210 = vector.broadcast %209 : vector<8x1xf32> to vector<8x128xf32>
      %211 = arith.subf %199, %210 : vector<8x128xf32>
      %212 = vector.broadcast %4 : vector<1x128xf32> to vector<8x128xf32>
      %213 = arith.mulf %211, %212 : vector<8x128xf32>
      %214 = arith.mulf %213, %213 : vector<8x128xf32>
      %cst_85 = arith.constant dense<0.000000e+00> : vector<8xf32>
      %215 = vector.multi_reduction <add>, %214, %cst_85 [1] : vector<8x128xf32> to vector<8xf32>
      %216 = vector.shape_cast %215 : vector<8xf32> to vector<8x1xf32>
      %cst_86 = arith.constant 3.125000e-02 : f32
      %217 = vector.broadcast %cst_86 : f32 to vector<8x1xf32>
      %218 = arith.mulf %216, %217 : vector<8x1xf32>
      %cst_87 = arith.constant 9.99999993E-9 : f32
      %219 = vector.broadcast %cst_87 : f32 to vector<8x1xf32>
      %220 = arith.addf %218, %219 : vector<8x1xf32>
      %221 = math.rsqrt %220 : vector<8x1xf32>
      %222 = vector.broadcast %221 : vector<8x1xf32> to vector<8x128xf32>
      %223 = arith.mulf %213, %222 : vector<8x128xf32>
      %224 = vector.broadcast %204 : vector<1x128xf32> to vector<8x128xf32>
      %225 = arith.mulf %224, %223 : vector<8x128xf32>
      %226 = vector.broadcast %205 : vector<1x128xf32> to vector<8x128xf32>
      %227 = arith.addf %225, %226 : vector<8x128xf32>
      %c0_88 = arith.constant 0 : index
      %c0_89 = arith.constant 0 : index
      %228 = vector.load %arg16[%c0_88, %c0_89] : memref<128x128xbf16, #tpu.memory_space<vmem>>, vector<128x128xbf16>
      %229 = arith.truncf %227 : vector<8x128xf32> to vector<8x128xbf16>
      %cst_90 = arith.constant dense<0.000000e+00> : vector<8x128xf32>
      %230 = tpu.matmul %229, %228, %cst_90 {dimension_numbers = #tpu.dot_dimension_numbers<[1], [0], [0], [1], [0, 0, 1, 1], [], []>} : vector<8x128xbf16>, vector<128x128xbf16>, vector<8x128xf32> -> vector<8x128xf32>
      %c0_91 = arith.constant 0 : index
      %c0_92 = arith.constant 0 : index
      %c0_93 = arith.constant 0 : index
      %231 = vector.load %arg17[%c0_91, %c0_92, %c0_93] : memref<1x8x128xf32, #tpu.memory_space<vmem>>, vector<1x8x128xf32>
      %232 = vector.shape_cast %231 : vector<1x8x128xf32> to vector<8x128xf32>
      %233 = vector.shape_cast %230 : vector<8x128xf32> to vector<1x8x128xf32>
      tpu.vector_store %arg17[%c0_91, %c0_92, %c0_93], %233 {strides = array<i32>} : memref<1x8x128xf32, #tpu.memory_space<vmem>>, vector<1x8x128xf32>,
    } else {
    }
    return
  }
  func.func @transform_0(%arg0: i32, %arg1: i32) -> (i32, i32, i32) {
    %c0_i32 = arith.constant 0 : i32
    %c0_i32_0 = arith.constant 0 : i32
    %c0_i32_1 = arith.constant 0 : i32
    return %arg0, %c0_i32, %c0_i32_0 : i32, i32, i32
  }
  func.func @transform_1(%arg0: i32, %arg1: i32) -> (i32, i32, i32) {
    %c0_i32 = arith.constant 0 : i32
    %c0_i32_0 = arith.constant 0 : i32
    %c0_i32_1 = arith.constant 0 : i32
    return %arg1, %c0_i32, %c0_i32_0 : i32, i32, i32
  }
  func.func @transform_2(%arg0: i32, %arg1: i32) -> (i32, i32, i32) {
    %c0_i32 = arith.constant 0 : i32
    %c0_i32_0 = arith.constant 0 : i32
    %c0_i32_1 = arith.constant 0 : i32
    return %arg1, %c0_i32, %c0_i32_0 : i32, i32, i32
  }
  func.func @transform_3(%arg0: i32, %arg1: i32) -> (i32, i32, i32) {
    %c0_i32 = arith.constant 0 : i32
    %c0_i32_0 = arith.constant 0 : i32
    %c0_i32_1 = arith.constant 0 : i32
    return %arg1, %c0_i32, %c0_i32_0 : i32, i32, i32
  }
  func.func @transform_4(%arg0: i32, %arg1: i32) -> (i32, i32, i32) {
    %c0_i32 = arith.constant 0 : i32
    %c0_i32_0 = arith.constant 0 : i32
    %c0_i32_1 = arith.constant 0 : i32
    return %arg1, %c0_i32, %c0_i32_0 : i32, i32, i32
  }
  func.func @transform_5(%arg0: i32, %arg1: i32) -> (i32, i32, i32) {
    %c0_i32 = arith.constant 0 : i32
    %c0_i32_0 = arith.constant 0 : i32
    %c0_i32_1 = arith.constant 0 : i32
    return %arg1, %c0_i32, %c0_i32_0 : i32, i32, i32
  }
  func.func @transform_6(%arg0: i32, %arg1: i32) -> (i32, i32, i32) {
    %c0_i32 = arith.constant 0 : i32
    %c0_i32_0 = arith.constant 0 : i32
    %c0_i32_1 = arith.constant 0 : i32
    return %arg1, %c0_i32, %c0_i32_0 : i32, i32, i32
  }
  func.func @transform_7(%arg0: i32, %arg1: i32) -> (i32, i32, i32) {
    %c0_i32 = arith.constant 0 : i32
    %c0_i32_0 = arith.constant 0 : i32
    %c0_i32_1 = arith.constant 0 : i32
    return %arg1, %c0_i32, %c0_i32_0 : i32, i32, i32
  }
  func.func @transform_8(%arg0: i32, %arg1: i32) -> (i32, i32, i32) {
    %c0_i32 = arith.constant 0 : i32
    %c0_i32_0 = arith.constant 0 : i32
    %c0_i32_1 = arith.constant 0 : i32
    return %arg1, %c0_i32, %c0_i32_0 : i32, i32, i32
  }
  func.func @transform_9(%arg0: i32, %arg1: i32) -> (i32, i32, i32) {
    %c0_i32 = arith.constant 0 : i32
    %c0_i32_0 = arith.constant 0 : i32
    %c0_i32_1 = arith.constant 0 : i32
    return %arg1, %c0_i32, %c0_i32_0 : i32, i32, i32
  }
  func.func @transform_10(%arg0: i32, %arg1: i32) -> (i32, i32, i32) {
    %c0_i32 = arith.constant 0 : i32
    %c0_i32_0 = arith.constant 0 : i32
    %c0_i32_1 = arith.constant 0 : i32
    return %arg1, %c0_i32, %c0_i32_0 : i32, i32, i32
  }
  func.func @transform_11(%arg0: i32, %arg1: i32) -> (i32, i32, i32) {
    %c0_i32 = arith.constant 0 : i32
    %c0_i32_0 = arith.constant 0 : i32
    %c0_i32_1 = arith.constant 0 : i32
    return %arg1, %c0_i32, %c0_i32_0 : i32, i32, i32
  }
  func.func @transform_12(%arg0: i32, %arg1: i32) -> (i32, i32) {
    %c0_i32 = arith.constant 0 : i32
    %c0_i32_0 = arith.constant 0 : i32
    %c0_i32_1 = arith.constant 0 : i32
    return %c0_i32, %c0_i32_0 : i32, i32
  }
  func.func @transform_13(%arg0: i32, %arg1: i32) -> (i32, i32) {
    %c0_i32 = arith.constant 0 : i32
    %c0_i32_0 = arith.constant 0 : i32
    %c0_i32_1 = arith.constant 0 : i32
    return %c0_i32, %c0_i32_0 : i32, i32
  }
  func.func @transform_14(%arg0: i32, %arg1: i32) -> (i32, i32) {
    %c0_i32 = arith.constant 0 : i32
    %c0_i32_0 = arith.constant 0 : i32
    %c0_i32_1 = arith.constant 0 : i32
    return %c0_i32, %c0_i32_0 : i32, i32
  }
  func.func @transform_15(%arg0: i32, %arg1: i32) -> (i32, i32, i32) {
    %c0_i32 = arith.constant 0 : i32
    %c0_i32_0 = arith.constant 0 : i32
    %c0_i32_1 = arith.constant 0 : i32
    return %arg0, %c0_i32, %c0_i32_0 : i32, i32, i32
  }
}

</mosaic_0001>

<llo_original>
// kernel: tpu_custom_call.1
$region0: #{tpu_custom_call.1}
  #allocation0 [shape = 'u32[]', space=smem, size = 0x4, offset = 0x4, fixed_abs, tag = 'smem constant byte address 0x4 - core index']
  #allocation1 [shape = 'u32[144,128]{1,0:T(1,128)}', space=vmem, size = 0x12000, scoped, tag = 'internal scratch']
  #allocation2 [shape = 'f32[8,128]{1,0:T(8,128)}', space=vmem, size = 0x1000, scoped, tag = 'scratch operand']
  %s0 = inlined_call_operand.hbm [shape: f32[2,8,128], index: 0, kind: input, shape index: {}]
  %s1 = inlined_call_operand.vmem [shape: bf16[2,128,96], index: 1, kind: input, shape index: {}]
  %s2 = inlined_call_operand.vmem [shape: bf16[2,32,128], index: 2, kind: input, shape index: {}]
  %s3 = inlined_call_operand.vmem [shape: f32[2,1,128], index: 3, kind: input, shape index: {}]
  %s4 = inlined_call_operand.vmem [shape: bf16[2,128,128], index: 4, kind: input, shape index: {}]
  %s5 = inlined_call_operand.vmem [shape: f32[2,1,128], index: 5, kind: input, shape index: {}]
  %s6 = inlined_call_operand.hbm [shape: bf16[2,128,128], index: 6, kind: input, shape index: {}]
  %s7 = inlined_call_operand.vmem [shape: f32[2,1,128], index: 7, kind: input, shape index: {}]
  %s8 = inlined_call_operand.vmem [shape: f32[2,1,128], index: 8, kind: input, shape index: {}]
  %s9 = inlined_call_operand.vmem [shape: f32[2,1,128], index: 9, kind: input, shape index: {}]
  %s10 = inlined_call_operand.vmem [shape: f32[2,1,128], index: 10, kind: input, shape index: {}]
  %s11 = inlined_call_operand.vmem [shape: f32[2,1,128], index: 11, kind: input, shape index: {}]
  %s12 = inlined_call_operand.vmem [shape: f32[1,128], index: 12, kind: input, shape index: {}]
  %s13 = inlined_call_operand.vmem [shape: f32[1,128], index: 13, kind: input, shape index: {}]
  %s14 = inlined_call_operand.vmem [shape: bf16[128,128], index: 14, kind: input, shape index: {}]
  %s15 = inlined_call_operand.hbm [shape: f32[2,8,128], index: 15, kind: output, shape index: {}]
  %s16 = sld [smem:[#allocation0]]
  $region109: #{tpu_custom_call.1} parent=0
    _
  %s18 = ssub.s32 1, %s16
  %s19 = scalar_select 0, %s18, %s16
  $region1: #{tpu_custom_call.1} parent=0
    #allocation3 [shape = 'u8[8192]{0}', space=vmem, size = 0x2000, scoped, tag = 'input window, operand 0']
    #allocation4 [shape = 's32[2]{0}', space=sflag, size = 0x8, scoped, tag = 'scoped memory for tpu_custom_call.1']
    #allocation5 [shape = 's32[2]{0}', space=sflag, size = 0x8, scoped, tag = 'scoped memory for tpu_custom_call.1']
    #allocation6 [shape = 'u8[65536]{0}', space=vmem, size = 0x10000, scoped, tag = 'input window, operand 6']
    #allocation7 [shape = 's32[2]{0}', space=sflag, size = 0x8, scoped, tag = 'scoped memory for tpu_custom_call.1']
    #allocation8 [shape = 'u8[8192]{0}', space=vmem, size = 0x2000, scoped, tag = 'output window, operand 0']
    %20 = vsyncpa [#allocation4], 0
    %s21 = scalar_lea.sflag [#allocation4], 1
    %22 = vsyncpa %s21, 0
    %23 = vsyncpa [#allocation7], 0
    %s24 = scalar_lea.sflag [#allocation7], 1
    %25 = vsyncpa %s24, 0
    %26 = vsyncpa [#allocation5], 0
    %s27 = scalar_lea.sflag [#allocation5], 1
    %28 = vsyncpa %s27, 0
    loop: start=0, step=1, limit=6
    $region2: #{tpu_custom_call.1} parent=1 // loop_pre_header
      _
    $region3: #{tpu_custom_call.1} parent=1 // loop_header
      %s30 = sphi 0, %s34
      %p31 = scmp.ge.s32.totalorder %s30, 6
      %s37 = sphi 0, %s49
      %s38 = sphi 0, %s45
      %s39 = sphi 0, %s37
      %s40 = sphi 0, %s38
      %s41 = sphi 0, %s39
      %s42 = sphi 0, %s40
      %s52 = sphi 0, %s54
      %s55 = sphi 0, %s52
      %s56 = sphi 0, %s55
      %s72 = sphi 0, %s56
      %s78 = sphi 0, %s80
      %s81 = sphi 0, %s78
      %s82 = sphi 0, %s81
      %s98 = sphi 0, %s82
      %s104 = sphi 0, %s106
      %s107 = sphi 0, %s104
      %s108 = sphi 0, %s107
      %s124 = sphi 0, %s108
      %s130 = sphi 0, %s132
      %s133 = sphi 0, %s130
      %s134 = sphi 0, %s133
      %s150 = sphi 0, %s134
      %s156 = sphi 0, %s158
      %s159 = sphi 0, %s156
      %s160 = sphi 0, %s159
      %s176 = sphi 0, %s160
      %s182 = sphi 0, %s184
      %s185 = sphi 0, %s182
      %s186 = sphi 0, %s185
      %s202 = sphi 0, %s186
      %s208 = sphi 0, %s210
      %s211 = sphi 0, %s208
      %s212 = sphi 0, %s211
      %s228 = sphi 0, %s212
      %s234 = sphi 0, %s236
      %s237 = sphi 0, %s234
      %s238 = sphi 0, %s237
      %s254 = sphi 0, %s238
      %s260 = sphi 0, %s262
      %s263 = sphi 0, %s260
      %s264 = sphi 0, %s263
      %s280 = sphi 0, %s264
      %s286 = sphi 0, %s288
      %s289 = sphi 0, %s286
      %s290 = sphi 0, %s289
      %s306 = sphi 0, %s290
      %s312 = sphi 0, %s314
      %s315 = sphi 0, %s312
      %s316 = sphi 0, %s315
      %s332 = sphi 0, %s316
      %s338 = sphi 0, %s340
      %s341 = sphi 0, %s338
      %s342 = sphi 0, %s341
      %s358 = sphi 0, %s342
      %s362 = sphi 0, %s362
      %s364 = sphi 0, %s362
      %s365 = sphi 0, %s364
      %s379 = sphi 0, %s365
      %s383 = sphi 0, %s383
      %s385 = sphi 0, %s383
      %s386 = sphi 0, %s385
      %s400 = sphi 0, %s386
      %s404 = sphi 0, %s404
      %s406 = sphi 0, %s404
      %s407 = sphi 0, %s406
      %s421 = sphi 0, %s407
      %s427 = sphi 0, %s429
      %s430 = sphi 0, %s427
      %s431 = sphi 0, %s430
      %s447 = sphi 0, %s431
    $region4: #{tpu_custom_call.1} parent=1 // loop_header_branch
      %33 = sbr.rel (%p31) target = $region8
    $region5: #{tpu_custom_call.1} parent=1 // loop_body
      %s35 = ssub.s32 %s30, 1
      %s36 = ssub.s32 %s30, 2
      %s43 = sadd.s32 1, %s38
      %p44 = scmp.ge.s32.totalorder %s43, 2
      %s45 = scalar_select %p44, 0, %s43
      %s46 = sadd.s32 1, %s37
      %s47 = scalar_select %p44, %s46, %s37
      %p48 = scmp.ge.s32.totalorder %s47, 2
      %s49 = scalar_select %p48, 0, %s47
      %s50 = ssub.s32 %s37, %s49
      %p51 = scmp.eq.s32.totalorder %s50, 0
      %s53 = sadd.s32 %s52, 1
      %s54 = scalar_select %p51, %s52, %s53
      %p57 = pneg %p51
      %p58 = scmp.eq.s32.totalorder %s30, 3
      %p59 = por %p57, %p58
      %p60 = scmp.ne.s32.totalorder %s52, %s55
      %p61 = scmp.eq.s32.totalorder %s30, 0
      %p62 = por %p60, %p61
      %p63 = scmp.ne.s32.totalorder %s52, %s55
      %p64 = scmp.eq.s32.totalorder %s35, 3
      %p65 = por %p63, %p64
      %p66 = scmp.ne.s32.totalorder %s55, %s56
      %p67 = scmp.eq.s32.totalorder %s35, 0
      %p68 = por %p66, %p67
      %p69 = scmp.ne.s32.totalorder %s55, %s56
      %p70 = scmp.eq.s32.totalorder %s36, 3
      %p71 = por %p69, %p70
      %p73 = scmp.ne.s32.totalorder %s56, %s72
      %p74 = scmp.eq.s32.totalorder %s36, 0
      %p75 = por %p73, %p74
      %s76 = ssub.s32 %s38, %s45
      %p77 = scmp.eq.s32.totalorder %s76, 0
      %s79 = sadd.s32 %s78, 1
      %s80 = scalar_select %p77, %s78, %s79
      %p83 = pneg %p77
      %p84 = scmp.eq.s32.totalorder %s30, 3
      %p85 = por %p83, %p84
      %p86 = scmp.ne.s32.totalorder %s78, %s81
      %p87 = scmp.eq.s32.totalorder %s30, 0
      %p88 = por %p86, %p87
      %p89 = scmp.ne.s32.totalorder %s78, %s81
      %p90 = scmp.eq.s32.totalorder %s35, 3
      %p91 = por %p89, %p90
      %p92 = scmp.ne.s32.totalorder %s81, %s82
      %p93 = scmp.eq.s32.totalorder %s35, 0
      %p94 = por %p92, %p93
      %p95 = scmp.ne.s32.totalorder %s81, %s82
      %p96 = scmp.eq.s32.totalorder %s36, 3
      %p97 = por %p95, %p96
      %p99 = scmp.ne.s32.totalorder %s82, %s98
      %p100 = scmp.eq.s32.totalorder %s36, 0
      %p101 = por %p99, %p100
      %s102 = ssub.s32 %s38, %s45
      %p103 = scmp.eq.s32.totalorder %s102, 0
      %s105 = sadd.s32 %s104, 1
      %s106 = scalar_select %p103, %s104, %s105
      %p109 = pneg %p103
      %p110 = scmp.eq.s32.totalorder %s30, 3
      %p111 = por %p109, %p110
      %p112 = scmp.ne.s32.totalorder %s104, %s107
      %p113 = scmp.eq.s32.totalorder %s30, 0
      %p114 = por %p112, %p113
      %p115 = scmp.ne.s32.totalorder %s104, %s107
      %p116 = scmp.eq.s32.totalorder %s35, 3
      %p117 = por %p115, %p116
      %p118 = scmp.ne.s32.totalorder %s107, %s108
      %p119 = scmp.eq.s32.totalorder %s35, 0
      %p120 = por %p118, %p119
      %p121 = scmp.ne.s32.totalorder %s107, %s108
      %p122 = scmp.eq.s32.totalorder %s36, 3
      %p123 = por %p121, %p122
      %p125 = scmp.ne.s32.totalorder %s108, %s124
      %p126 = scmp.eq.s32.totalorder %s36, 0
      %p127 = por %p125, %p126
      %s128 = ssub.s32 %s38, %s45
      %p129 = scmp.eq.s32.totalorder %s128, 0
      %s131 = sadd.s32 %s130, 1
      %s132 = scalar_select %p129, %s130, %s131
      %p135 = pneg %p129
      %p136 = scmp.eq.s32.totalorder %s30, 3
      %p137 = por %p135, %p136
      %p138 = scmp.ne.s32.totalorder %s130, %s133
      %p139 = scmp.eq.s32.totalorder %s30, 0
      %p140 = por %p138, %p139
      %p141 = scmp.ne.s32.totalorder %s130, %s133
      %p142 = scmp.eq.s32.totalorder %s35, 3
      %p143 = por %p141, %p142
      %p144 = scmp.ne.s32.totalorder %s133, %s134
      %p145 = scmp.eq.s32.totalorder %s35, 0
      %p146 = por %p144, %p145
      %p147 = scmp.ne.s32.totalorder %s133, %s134
      %p148 = scmp.eq.s32.totalorder %s36, 3
      %p149 = por %p147, %p148
      %p151 = scmp.ne.s32.totalorder %s134, %s150
      %p152 = scmp.eq.s32.totalorder %s36, 0
      %p153 = por %p151, %p152
      %s154 = ssub.s32 %s38, %s45
      %p155 = scmp.eq.s32.totalorder %s154, 0
      %s157 = sadd.s32 %s156, 1
      %s158 = scalar_select %p155, %s156, %s157
      %p161 = pneg %p155
      %p162 = scmp.eq.s32.totalorder %s30, 3
      %p163 = por %p161, %p162
      %p164 = scmp.ne.s32.totalorder %s156, %s159
      %p165 = scmp.eq.s32.totalorder %s30, 0
      %p166 = por %p164, %p165
      %p167 = scmp.ne.s32.totalorder %s156, %s159
      %p168 = scmp.eq.s32.totalorder %s35, 3
      %p169 = por %p167, %p168
      %p170 = scmp.ne.s32.totalorder %s159, %s160
      %p171 = scmp.eq.s32.totalorder %s35, 0
      %p172 = por %p170, %p171
      %p173 = scmp.ne.s32.totalorder %s159, %s160
      %p174 = scmp.eq.s32.totalorder %s36, 3
      %p175 = por %p173, %p174
      %p177 = scmp.ne.s32.totalorder %s160, %s176
      %p178 = scmp.eq.s32.totalorder %s36, 0
      %p179 = por %p177, %p178
      %s180 = ssub.s32 %s38, %s45
      %p181 = scmp.eq.s32.totalorder %s180, 0
      %s183 = sadd.s32 %s182, 1
      %s184 = scalar_select %p181, %s182, %s183
      %p187 = pneg %p181
      %p188 = scmp.eq.s32.totalorder %s30, 3
      %p189 = por %p187, %p188
      %p190 = scmp.ne.s32.totalorder %s182, %s185
      %p191 = scmp.eq.s32.totalorder %s30, 0
      %p192 = por %p190, %p191
      %p193 = scmp.ne.s32.totalorder %s182, %s185
      %p194 = scmp.eq.s32.totalorder %s35, 3
      %p195 = por %p193, %p194
      %p196 = scmp.ne.s32.totalorder %s185, %s186
      %p197 = scmp.eq.s32.totalorder %s35, 0
      %p198 = por %p196, %p197
      %p199 = scmp.ne.s32.totalorder %s185, %s186
      %p200 = scmp.eq.s32.totalorder %s36, 3
      %p201 = por %p199, %p200
      %p203 = scmp.ne.s32.totalorder %s186, %s202
      %p204 = scmp.eq.s32.totalorder %s36, 0
      %p205 = por %p203, %p204
      %s206 = ssub.s32 %s38, %s45
      %p207 = scmp.eq.s32.totalorder %s206, 0
      %s209 = sadd.s32 %s208, 1
      %s210 = scalar_select %p207, %s208, %s209
      %p213 = pneg %p207
      %p214 = scmp.eq.s32.totalorder %s30, 3
      %p215 = por %p213, %p214
      %p216 = scmp.ne.s32.totalorder %s208, %s211
      %p217 = scmp.eq.s32.totalorder %s30, 0
      %p218 = por %p216, %p217
      %p219 = scmp.ne.s32.totalorder %s208, %s211
      %p220 = scmp.eq.s32.totalorder %s35, 3
      %p221 = por %p219, %p220
      %p222 = scmp.ne.s32.totalorder %s211, %s212
      %p223 = scmp.eq.s32.totalorder %s35, 0
      %p224 = por %p222, %p223
      %p225 = scmp.ne.s32.totalorder %s211, %s212
      %p226 = scmp.eq.s32.totalorder %s36, 3
      %p227 = por %p225, %p226
      %p229 = scmp.ne.s32.totalorder %s212, %s228
      %p230 = scmp.eq.s32.totalorder %s36, 0
      %p231 = por %p229, %p230
      %s232 = ssub.s32 %s38, %s45
      %p233 = scmp.eq.s32.totalorder %s232, 0
      %s235 = sadd.s32 %s234, 1
      %s236 = scalar_select %p233, %s234, %s235
      %p239 = pneg %p233
      %p240 = scmp.eq.s32.totalorder %s30, 3
      %p241 = por %p239, %p240
      %p242 = scmp.ne.s32.totalorder %s234, %s237
      %p243 = scmp.eq.s32.totalorder %s30, 0
      %p244 = por %p242, %p243
      %p245 = scmp.ne.s32.totalorder %s234, %s237
      %p246 = scmp.eq.s32.totalorder %s35, 3
      %p247 = por %p245, %p246
      %p248 = scmp.ne.s32.totalorder %s237, %s238
      %p249 = scmp.eq.s32.totalorder %s35, 0
      %p250 = por %p248, %p249
      %p251 = scmp.ne.s32.totalorder %s237, %s238
      %p252 = scmp.eq.s32.totalorder %s36, 3
      %p253 = por %p251, %p252
      %p255 = scmp.ne.s32.totalorder %s238, %s254
      %p256 = scmp.eq.s32.totalorder %s36, 0
      %p257 = por %p255, %p256
      %s258 = ssub.s32 %s38, %s45
      %p259 = scmp.eq.s32.totalorder %s258, 0
      %s261 = sadd.s32 %s260, 1
      %s262 = scalar_select %p259, %s260, %s261
      %p265 = pneg %p259
      %p266 = scmp.eq.s32.totalorder %s30, 3
      %p267 = por %p265, %p266
      %p268 = scmp.ne.s32.totalorder %s260, %s263
      %p269 = scmp.eq.s32.totalorder %s30, 0
      %p270 = por %p268, %p269
      %p271 = scmp.ne.s32.totalorder %s260, %s263
      %p272 = scmp.eq.s32.totalorder %s35, 3
      %p273 = por %p271, %p272
      %p274 = scmp.ne.s32.totalorder %s263, %s264
      %p275 = scmp.eq.s32.totalorder %s35, 0
      %p276 = por %p274, %p275
      %p277 = scmp.ne.s32.totalorder %s263, %s264
      %p278 = scmp.eq.s32.totalorder %s36, 3
      %p279 = por %p277, %p278
      %p281 = scmp.ne.s32.totalorder %s264, %s280
      %p282 = scmp.eq.s32.totalorder %s36, 0
      %p283 = por %p281, %p282
      %s284 = ssub.s32 %s38, %s45
      %p285 = scmp.eq.s32.totalorder %s284, 0
      %s287 = sadd.s32 %s286, 1
      %s288 = scalar_select %p285, %s286, %s287
      %p291 = pneg %p285
      %p292 = scmp.eq.s32.totalorder %s30, 3
      %p293 = por %p291, %p292
      %p294 = scmp.ne.s32.totalorder %s286, %s289
      %p295 = scmp.eq.s32.totalorder %s30, 0
      %p296 = por %p294, %p295
      %p297 = scmp.ne.s32.totalorder %s286, %s289
      %p298 = scmp.eq.s32.totalorder %s35, 3
      %p299 = por %p297, %p298
      %p300 = scmp.ne.s32.totalorder %s289, %s290
      %p301 = scmp.eq.s32.totalorder %s35, 0
      %p302 = por %p300, %p301
      %p303 = scmp.ne.s32.totalorder %s289, %s290
      %p304 = scmp.eq.s32.totalorder %s36, 3
      %p305 = por %p303, %p304
      %p307 = scmp.ne.s32.totalorder %s290, %s306
      %p308 = scmp.eq.s32.totalorder %s36, 0
      %p309 = por %p307, %p308
      %s310 = ssub.s32 %s38, %s45
      %p311 = scmp.eq.s32.totalorder %s310, 0
      %s313 = sadd.s32 %s312, 1
      %s314 = scalar_select %p311, %s312, %s313
      %p317 = pneg %p311
      %p318 = scmp.eq.s32.totalorder %s30, 3
      %p319 = por %p317, %p318
      %p320 = scmp.ne.s32.totalorder %s312, %s315
      %p321 = scmp.eq.s32.totalorder %s30, 0
      %p322 = por %p320, %p321
      %p323 = scmp.ne.s32.totalorder %s312, %s315
      %p324 = scmp.eq.s32.totalorder %s35, 3
      %p325 = por %p323, %p324
      %p326 = scmp.ne.s32.totalorder %s315, %s316
      %p327 = scmp.eq.s32.totalorder %s35, 0
      %p328 = por %p326, %p327
      %p329 = scmp.ne.s32.totalorder %s315, %s316
      %p330 = scmp.eq.s32.totalorder %s36, 3
      %p331 = por %p329, %p330
      %p333 = scmp.ne.s32.totalorder %s316, %s332
      %p334 = scmp.eq.s32.totalorder %s36, 0
      %p335 = por %p333, %p334
      %s336 = ssub.s32 %s38, %s45
      %p337 = scmp.eq.s32.totalorder %s336, 0
      %s339 = sadd.s32 %s338, 1
      %s340 = scalar_select %p337, %s338, %s339
      %p343 = pneg %p337
      %p344 = scmp.eq.s32.totalorder %s30, 3
      %p345 = por %p343, %p344
      %p346 = scmp.ne.s32.totalorder %s338, %s341
      %p347 = scmp.eq.s32.totalorder %s30, 0
      %p348 = por %p346, %p347
      %p349 = scmp.ne.s32.totalorder %s338, %s341
      %p350 = scmp.eq.s32.totalorder %s35, 3
      %p351 = por %p349, %p350
      %p352 = scmp.ne.s32.totalorder %s341, %s342
      %p353 = scmp.eq.s32.totalorder %s35, 0
      %p354 = por %p352, %p353
      %p355 = scmp.ne.s32.totalorder %s341, %s342
      %p356 = scmp.eq.s32.totalorder %s36, 3
      %p357 = por %p355, %p356
      %p359 = scmp.ne.s32.totalorder %s342, %s358
      %p360 = scmp.eq.s32.totalorder %s36, 0
      %p361 = por %p359, %p360
      %s363 = sadd.s32 %s362, 1
      %p366 = scmp.eq.s32.totalorder %s30, 3
      %p367 = scmp.ne.s32.totalorder %s362, %s364
      %p368 = scmp.eq.s32.totalorder %s30, 0
      %p369 = por %p367, %p368
      %p370 = scmp.ne.s32.totalorder %s362, %s364
      %p371 = scmp.eq.s32.totalorder %s35, 3
      %p372 = por %p370, %p371
      %p373 = scmp.ne.s32.totalorder %s364, %s365
      %p374 = scmp.eq.s32.totalorder %s35, 0
      %p375 = por %p373, %p374
      %p376 = scmp.ne.s32.totalorder %s364, %s365
      %p377 = scmp.eq.s32.totalorder %s36, 3
      %p378 = por %p376, %p377
      %p380 = scmp.ne.s32.totalorder %s365, %s379
      %p381 = scmp.eq.s32.totalorder %s36, 0
      %p382 = por %p380, %p381
      %s384 = sadd.s32 %s383, 1
      %p387 = scmp.eq.s32.totalorder %s30, 3
      %p388 = scmp.ne.s32.totalorder %s383, %s385
      %p389 = scmp.eq.s32.totalorder %s30, 0
      %p390 = por %p388, %p389
      %p391 = scmp.ne.s32.totalorder %s383, %s385
      %p392 = scmp.eq.s32.totalorder %s35, 3
      %p393 = por %p391, %p392
      %p394 = scmp.ne.s32.totalorder %s385, %s386
      %p395 = scmp.eq.s32.totalorder %s35, 0
      %p396 = por %p394, %p395
      %p397 = scmp.ne.s32.totalorder %s385, %s386
      %p398 = scmp.eq.s32.totalorder %s36, 3
      %p399 = por %p397, %p398
      %p401 = scmp.ne.s32.totalorder %s386, %s400
      %p402 = scmp.eq.s32.totalorder %s36, 0
      %p403 = por %p401, %p402
      %s405 = sadd.s32 %s404, 1
      %p408 = scmp.eq.s32.totalorder %s30, 3
      %p409 = scmp.ne.s32.totalorder %s404, %s406
      %p410 = scmp.eq.s32.totalorder %s30, 0
      %p411 = por %p409, %p410
      %p412 = scmp.ne.s32.totalorder %s404, %s406
      %p413 = scmp.eq.s32.totalorder %s35, 3
      %p414 = por %p412, %p413
      %p415 = scmp.ne.s32.totalorder %s406, %s407
      %p416 = scmp.eq.s32.totalorder %s35, 0
      %p417 = por %p415, %p416
      %p418 = scmp.ne.s32.totalorder %s406, %s407
      %p419 = scmp.eq.s32.totalorder %s36, 3
      %p420 = por %p418, %p419
      %p422 = scmp.ne.s32.totalorder %s407, %s421
      %p423 = scmp.eq.s32.totalorder %s36, 0
      %p424 = por %p422, %p423
      %s425 = ssub.s32 %s37, %s49
      %p426 = scmp.eq.s32.totalorder %s425, 0
      %s428 = sadd.s32 %s427, 1
      %s429 = scalar_select %p426, %s427, %s428
      %p432 = pneg %p426
      %p433 = scmp.eq.s32.totalorder %s30, 3
      %p434 = por %p432, %p433
      %p435 = scmp.ne.s32.totalorder %s427, %s430
      %p436 = scmp.eq.s32.totalorder %s30, 0
      %p437 = por %p435, %p436
      %p438 = scmp.ne.s32.totalorder %s427, %s430
      %p439 = scmp.eq.s32.totalorder %s35, 3
      %p440 = por %p438, %p439
      %p441 = scmp.ne.s32.totalorder %s430, %s431
      %p442 = scmp.eq.s32.totalorder %s35, 0
      %p443 = por %p441, %p442
      %p444 = scmp.ne.s32.totalorder %s430, %s431
      %p445 = scmp.eq.s32.totalorder %s36, 3
      %p446 = por %p444, %p445
      %p448 = scmp.ne.s32.totalorder %s431, %s447
      %p449 = scmp.eq.s32.totalorder %s36, 0
      %p450 = por %p448, %p449
      %p451 = scmp.le.s32.totalorder 1, %s30
      %p452 = scmp.lt.s32.totalorder %s30, 5
      %p453 = pnand %p451, %p452
      %p454 = pneg %p453
      // Predicated region
      $region9: #{tpu_custom_call.1} parent=5 // pred_check
        _
      $region10: #{tpu_custom_call.1} parent=5 // pred_check_branch
        %456 = sbr.rel (%p453) target = $region12
      $region11: #{tpu_custom_call.1} parent=5 // pred_region
        %s457 = ssub.s32 %s30, 1
        // Predicated region
        $region13: #{tpu_custom_call.1} parent=11 // pred_check
          %p458 = pneg %p375
        $region14: #{tpu_custom_call.1} parent=11 // pred_check_branch
          %460 = sbr.rel (%p458) target = $region16
        $region15: #{tpu_custom_call.1} parent=11 // pred_region
          _
        $region16: #{tpu_custom_call.1} parent=11 // pred_fallthru
          _
        // Predicated region
        $region17: #{tpu_custom_call.1} parent=11 // pred_check
          %p461 = pneg %p396
        $region18: #{tpu_custom_call.1} parent=11 // pred_check_branch
          %463 = sbr.rel (%p461) target = $region20
        $region19: #{tpu_custom_call.1} parent=11 // pred_region
          _
        $region20: #{tpu_custom_call.1} parent=11 // pred_fallthru
          _
        // Predicated region
        $region21: #{tpu_custom_call.1} parent=11 // pred_check
          %p464 = pneg %p417
        $region22: #{tpu_custom_call.1} parent=11 // pred_check_branch
          %466 = sbr.rel (%p464) target = $region24
        $region23: #{tpu_custom_call.1} parent=11 // pred_region
          _
        $region24: #{tpu_custom_call.1} parent=11 // pred_fallthru
          _
      $region12: #{tpu_custom_call.1} parent=5 // pred_fallthru
        _
      %p467 = scmp.lt.s32.totalorder %s30, 4
      // Predicated region
      $region25: #{tpu_custom_call.1} parent=5 // pred_check
        %p468 = pneg %p467
      $region26: #{tpu_custom_call.1} parent=5 // pred_check_branch
        %470 = sbr.rel (%p468) target = $region28
      $region27: #{tpu_custom_call.1} parent=5 // pred_region
        // Predicated region
        $region29: #{tpu_custom_call.1} parent=27 // pred_check
          %p471 = pneg %p62
        $region30: #{tpu_custom_call.1} parent=27 // pred_check_branch
          %473 = sbr.rel (%p471) target = $region32
        $region31: #{tpu_custom_call.1} parent=27 // pred_region
          %s474 = sand.u32 %s52, 1
          %s475 = scalar_lea.sflag [#allocation4], %s474
          %s476 = sand.u32 %s52, 1
          %s477 = smul.addr %s476, 8
          %s478 = scalar_lea.vmem [#allocation3], %s477
          %s480 = ssub.s32 128, 128
          %481 = vsyncadd %s475, %s480
          %s482 = smul.addr %s37, 128
          %s483 = scalar_lea.hbm %s0, %s482
          %s485 = sshll.u32 %s478, 4
          %s486 = int_to_ptr.vmem [resolvable:$true] %s485
          %488 = dma.hbm_to_vmem [thread:$0]  %s483, 128, %s486, %s475
        $region32: #{tpu_custom_call.1} parent=27 // pred_fallthru
          _
        // Predicated region
        $region33: #{tpu_custom_call.1} parent=27 // pred_check
          %p489 = pneg %p88
        $region34: #{tpu_custom_call.1} parent=27 // pred_check_branch
          %491 = sbr.rel (%p489) target = $region36
        $region35: #{tpu_custom_call.1} parent=27 // pred_region
          %p492 = scmp.lt.s32.totalorder %s38, 1
          %s493 = scalar_select %p492, %s38, 1
          %s494 = smul.addr %s493, 16
          %s495 = smul.addr %s494, 4
          %s496 = scalar_lea.vmem %s1, %s495
        $region36: #{tpu_custom_call.1} parent=27 // pred_fallthru
          _
        // Predicated region
        $region37: #{tpu_custom_call.1} parent=27 // pred_check
          %p497 = pneg %p114
        $region38: #{tpu_custom_call.1} parent=27 // pred_check_branch
          %499 = sbr.rel (%p497) target = $region40
        $region39: #{tpu_custom_call.1} parent=27 // pred_region
          %p500 = scmp.lt.s32.totalorder %s38, 1
          %s501 = scalar_select %p500, %s38, 1
          %s502 = smul.addr %s501, 4
          %s503 = smul.addr %s502, 4
          %s504 = scalar_lea.vmem %s2, %s503
        $region40: #{tpu_custom_call.1} parent=27 // pred_fallthru
          _
        // Predicated region
        $region41: #{tpu_custom_call.1} parent=27 // pred_check
          %p505 = pneg %p140
        $region42: #{tpu_custom_call.1} parent=27 // pred_check_branch
          %507 = sbr.rel (%p505) target = $region44
        $region43: #{tpu_custom_call.1} parent=27 // pred_region
          %p508 = scmp.lt.s32.totalorder %s38, 1
          %s509 = scalar_select %p508, %s38, 1
          %s510 = scalar_lea.vmem %s3, %s509
        $region44: #{tpu_custom_call.1} parent=27 // pred_fallthru
          _
        // Predicated region
        $region45: #{tpu_custom_call.1} parent=27 // pred_check
          %p511 = pneg %p166
        $region46: #{tpu_custom_call.1} parent=27 // pred_check_branch
          %513 = sbr.rel (%p511) target = $region48
        $region47: #{tpu_custom_call.1} parent=27 // pred_region
          %p514 = scmp.lt.s32.totalorder %s38, 1
          %s515 = scalar_select %p514, %s38, 1
          %s516 = smul.addr %s515, 16
          %s517 = smul.addr %s516, 4
          %s518 = scalar_lea.vmem %s4, %s517
        $region48: #{tpu_custom_call.1} parent=27 // pred_fallthru
          _
        // Predicated region
        $region49: #{tpu_custom_call.1} parent=27 // pred_check
          %p519 = pneg %p192
        $region50: #{tpu_custom_call.1} parent=27 // pred_check_branch
          %521 = sbr.rel (%p519) target = $region52
        $region51: #{tpu_custom_call.1} parent=27 // pred_region
          %p522 = scmp.lt.s32.totalorder %s38, 1
          %s523 = scalar_select %p522, %s38, 1
          %s524 = scalar_lea.vmem %s5, %s523
        $region52: #{tpu_custom_call.1} parent=27 // pred_fallthru
          _
        // Predicated region
        $region53: #{tpu_custom_call.1} parent=27 // pred_check
          %p525 = pneg %p218
        $region54: #{tpu_custom_call.1} parent=27 // pred_check_branch
          %527 = sbr.rel (%p525) target = $region56
        $region55: #{tpu_custom_call.1} parent=27 // pred_region
          %s528 = sand.u32 %s208, 1
          %s529 = scalar_lea.sflag [#allocation7], %s528
          %s530 = sand.u32 %s208, 1
          %s531 = smul.addr %s530, 64
          %s532 = scalar_lea.vmem [#allocation6], %s531
          %s534 = ssub.s32 1024, 1024
          %535 = vsyncadd %s529, %s534
          %s536 = smul.addr %s38, 16
          %s537 = smul.addr %s536, 64
          %s538 = scalar_lea.hbm %s6, %s537
          %s539 = sshll.u32 %s532, 4
          %s540 = int_to_ptr.vmem [resolvable:$true] %s539
          %545 = dma.hbm_to_vmem [thread:$0]  %s538, 1024, %s540, %s529, 64, 64, 4
        $region56: #{tpu_custom_call.1} parent=27 // pred_fallthru
          _
        // Predicated region
        $region57: #{tpu_custom_call.1} parent=27 // pred_check
          %p546 = pneg %p244
        $region58: #{tpu_custom_call.1} parent=27 // pred_check_branch
          %548 = sbr.rel (%p546) target = $region60
        $region59: #{tpu_custom_call.1} parent=27 // pred_region
          %p549 = scmp.lt.s32.totalorder %s38, 1
          %s550 = scalar_select %p549, %s38, 1
          %s551 = scalar_lea.vmem %s7, %s550
        $region60: #{tpu_custom_call.1} parent=27 // pred_fallthru
          _
        // Predicated region
        $region61: #{tpu_custom_call.1} parent=27 // pred_check
          %p552 = pneg %p270
        $region62: #{tpu_custom_call.1} parent=27 // pred_check_branch
          %554 = sbr.rel (%p552) target = $region64
        $region63: #{tpu_custom_call.1} parent=27 // pred_region
          %p555 = scmp.lt.s32.totalorder %s38, 1
          %s556 = scalar_select %p555, %s38, 1
          %s557 = scalar_lea.vmem %s8, %s556
        $region64: #{tpu_custom_call.1} parent=27 // pred_fallthru
          _
        // Predicated region
        $region65: #{tpu_custom_call.1} parent=27 // pred_check
          %p558 = pneg %p296
        $region66: #{tpu_custom_call.1} parent=27 // pred_check_branch
          %560 = sbr.rel (%p558) target = $region68
        $region67: #{tpu_custom_call.1} parent=27 // pred_region
          %p561 = scmp.lt.s32.totalorder %s38, 1
          %s562 = scalar_select %p561, %s38, 1
          %s563 = scalar_lea.vmem %s9, %s562
        $region68: #{tpu_custom_call.1} parent=27 // pred_fallthru
          _
        // Predicated region
        $region69: #{tpu_custom_call.1} parent=27 // pred_check
          %p564 = pneg %p322
        $region70: #{tpu_custom_call.1} parent=27 // pred_check_branch
          %566 = sbr.rel (%p564) target = $region72
        $region71: #{tpu_custom_call.1} parent=27 // pred_region
          %p567 = scmp.lt.s32.totalorder %s38, 1
          %s568 = scalar_select %p567, %s38, 1
          %s569 = scalar_lea.vmem %s10, %s568
        $region72: #{tpu_custom_call.1} parent=27 // pred_fallthru
          _
        // Predicated region
        $region73: #{tpu_custom_call.1} parent=27 // pred_check
          %p570 = pneg %p348
        $region74: #{tpu_custom_call.1} parent=27 // pred_check_branch
          %572 = sbr.rel (%p570) target = $region76
        $region75: #{tpu_custom_call.1} parent=27 // pred_region
          %p573 = scmp.lt.s32.totalorder %s38, 1
          %s574 = scalar_select %p573, %s38, 1
          %s575 = scalar_lea.vmem %s11, %s574
        $region76: #{tpu_custom_call.1} parent=27 // pred_fallthru
          _
      $region28: #{tpu_custom_call.1} parent=5 // pred_fallthru
        _
      %p576 = scmp.le.s32.totalorder 1, %s30
      %p577 = scmp.lt.s32.totalorder %s30, 5
      %p578 = pnand %p576, %p577
      %p579 = pneg %p578
      // Predicated region
      $region77: #{tpu_custom_call.1} parent=5 // pred_check
        _
      $region78: #{tpu_custom_call.1} parent=5 // pred_check_branch
        %581 = sbr.rel (%p578) target = $region80
      $region79: #{tpu_custom_call.1} parent=5 // pred_region
        %s582 = ssub.s32 %s30, 1
        %s583 = sand.u32 %s55, 1
        %s584 = scalar_lea.sflag [#allocation4], %s583
        %s585 = sand.u32 %s55, 1
        %s586 = smul.addr %s585, 8
        %s587 = scalar_lea.vmem [#allocation3], %s586
        // Predicated region
        $region81: #{tpu_custom_call.1} parent=79 // pred_check
          %p588 = pneg %p68
        $region82: #{tpu_custom_call.1} parent=79 // pred_check_branch
          %590 = sbr.rel (%p588) target = $region84
        $region83: #{tpu_custom_call.1} parent=79 // pred_region
          %591 = dma.done %s584, 128
        $region84: #{tpu_custom_call.1} parent=79 // pred_fallthru
          _
        %s592 = sand.u32 %s211, 1
        %s593 = scalar_lea.sflag [#allocation7], %s592
        %s594 = sand.u32 %s211, 1
        %s595 = smul.addr %s594, 64
        %s596 = scalar_lea.vmem [#allocation6], %s595
        // Predicated region
        $region85: #{tpu_custom_call.1} parent=79 // pred_check
          %p597 = pneg %p224
        $region86: #{tpu_custom_call.1} parent=79 // pred_check_branch
          %599 = sbr.rel (%p597) target = $region88
        $region87: #{tpu_custom_call.1} parent=79 // pred_region
          %600 = dma.done %s593, 1024
        $region88: #{tpu_custom_call.1} parent=79 // pred_fallthru
          _
        %s601 = sand.u32 %s55, 1
        %s602 = scalar_lea.sflag [#allocation4], %s601
        %s603 = sand.u32 %s55, 1
        %s604 = smul.addr %s603, 8
        %s605 = scalar_lea.vmem [#allocation3], %s604
        %p606 = pneg %p68
        %p607 = pneg %p65
        %p608 = scmp.lt.s32.totalorder %s40, 1
        %s609 = scalar_select %p608, %s40, 1
        %s610 = smul.addr %s609, 16
        %s611 = smul.addr %s610, 4
        %s612 = scalar_lea.vmem %s1, %s611
        %p613 = pneg %p94
        %p614 = pneg %p91
        %p615 = scmp.lt.s32.totalorder %s40, 1
        %s616 = scalar_select %p615, %s40, 1
        %s617 = smul.addr %s616, 4
        %s618 = smul.addr %s617, 4
        %s619 = scalar_lea.vmem %s2, %s618
        %p620 = pneg %p120
        %p621 = pneg %p117
        %p622 = scmp.lt.s32.totalorder %s40, 1
        %s623 = scalar_select %p622, %s40, 1
        %s624 = scalar_lea.vmem %s3, %s623
        %p625 = pneg %p146
        %p626 = pneg %p143
        %p627 = scmp.lt.s32.totalorder %s40, 1
        %s628 = scalar_select %p627, %s40, 1
        %s629 = smul.addr %s628, 16
        %s630 = smul.addr %s629, 4
        %s631 = scalar_lea.vmem %s4, %s630
        %p632 = pneg %p172
        %p633 = pneg %p169
        %p634 = scmp.lt.s32.totalorder %s40, 1
        %s635 = scalar_select %p634, %s40, 1
        %s636 = scalar_lea.vmem %s5, %s635
        %p637 = pneg %p198
        %p638 = pneg %p195
        %s639 = sand.u32 %s211, 1
        %s640 = scalar_lea.sflag [#allocation7], %s639
        %s641 = sand.u32 %s211, 1
        %s642 = smul.addr %s641, 64
        %s643 = scalar_lea.vmem [#allocation6], %s642
        %p644 = pneg %p224
        %p645 = pneg %p221
        %p646 = scmp.lt.s32.totalorder %s40, 1
        %s647 = scalar_select %p646, %s40, 1
        %s648 = scalar_lea.vmem %s7, %s647
        %p649 = pneg %p250
        %p650 = pneg %p247
        %p651 = scmp.lt.s32.totalorder %s40, 1
        %s652 = scalar_select %p651, %s40, 1
        %s653 = scalar_lea.vmem %s8, %s652
        %p654 = pneg %p276
        %p655 = pneg %p273
        %p656 = scmp.lt.s32.totalorder %s40, 1
        %s657 = scalar_select %p656, %s40, 1
        %s658 = scalar_lea.vmem %s9, %s657
        %p659 = pneg %p302
        %p660 = pneg %p299
        %p661 = scmp.lt.s32.totalorder %s40, 1
        %s662 = scalar_select %p661, %s40, 1
        %s663 = scalar_lea.vmem %s10, %s662
        %p664 = pneg %p328
        %p665 = pneg %p325
        %p666 = scmp.lt.s32.totalorder %s40, 1
        %s667 = scalar_select %p666, %s40, 1
        %s668 = scalar_lea.vmem %s11, %s667
        %p669 = pneg %p354
        %p670 = pneg %p351
        %p671 = pneg %p375
        %p672 = pneg %p372
        %p673 = pneg %p396
        %p674 = pneg %p393
        %p675 = pneg %p417
        %p676 = pneg %p414
        %p677 = pneg %p443
        %p678 = pneg %p440
        %s679 = sand.u32 %s430, 1
        %s680 = scalar_lea.sflag [#allocation5], %s679
        %s681 = sand.u32 %s430, 1
        %s682 = smul.addr %s681, 8
        %s683 = scalar_lea.vmem [#allocation8], %s682
        %p684 = scmp.lt.s32.totalorder %s40, 1
        %s685 = scalar_select %p684, %s40, 1
        %s686 = smul.addr %s685, 16
        %s687 = smul.addr %s686, 4
        %s688 = scalar_lea.vmem %s1, %s687
        %p689 = scmp.lt.s32.totalorder %s40, 1
        %s690 = scalar_select %p689, %s40, 1
        %s691 = smul.addr %s690, 4
        %s692 = smul.addr %s691, 4
        %s693 = scalar_lea.vmem %s2, %s692
        %p694 = scmp.lt.s32.totalorder %s40, 1
        %s695 = scalar_select %p694, %s40, 1
        %s696 = scalar_lea.vmem %s3, %s695
        %p697 = scmp.lt.s32.totalorder %s40, 1
        %s698 = scalar_select %p697, %s40, 1
        %s699 = smul.addr %s698, 16
        %s700 = smul.addr %s699, 4
        %s701 = scalar_lea.vmem %s4, %s700
        %p702 = scmp.lt.s32.totalorder %s40, 1
        %s703 = scalar_select %p702, %s40, 1
        %s704 = scalar_lea.vmem %s5, %s703
        %p705 = scmp.lt.s32.totalorder %s40, 1
        %s706 = scalar_select %p705, %s40, 1
        %s707 = scalar_lea.vmem %s7, %s706
        %p708 = scmp.lt.s32.totalorder %s40, 1
        %s709 = scalar_select %p708, %s40, 1
        %s710 = scalar_lea.vmem %s8, %s709
        %p711 = scmp.lt.s32.totalorder %s40, 1
        %s712 = scalar_select %p711, %s40, 1
        %s713 = scalar_lea.vmem %s9, %s712
        %p714 = scmp.lt.s32.totalorder %s40, 1
        %s715 = scalar_select %p714, %s40, 1
        %s716 = scalar_lea.vmem %s10, %s715
        %p717 = scmp.lt.s32.totalorder %s40, 1
        %s718 = scalar_select %p717, %s40, 1
        %s719 = scalar_lea.vmem %s11, %s718
        %v721 = vlaneseq
        %v722 = vand.u32 %v721, 127
        %vm723 = vcmp.lt.s32.totalorder %v722, 32
        %v724 = vsel %vm723, 1, 0
        %v725 = vcvt.s32.f32 %v724
        %p726 = scmp.eq.s32.totalorder %s40, 0
        // Predicated region
        $region89: #{tpu_custom_call.1} parent=79 // pred_check
          %p727 = pneg %p726
        $region90: #{tpu_custom_call.1} parent=79 // pred_check_branch
          %729 = sbr.rel (%p727) target = $region92
        $region91: #{tpu_custom_call.1} parent=79 // pred_region
          %v730 = vld [vmem:[%s587] sm:$0xff]
          %731 = vst [vmem:[#allocation2] sm:$0xff] %v730
        $region92: #{tpu_custom_call.1} parent=79 // pred_fallthru
          _
        %v732 = vld [vmem:[#allocation2] sm:$0xff]
        %v733 = vld [vmem:[%s710] sm:$0x1]
        %v734 = vld [vmem:[%s713] sm:$0x1]
        %735 = vadd.xlane.f32.xlu0 %v732
        %v736 = vpop.xlane.xlu0 %735
        %v737 = vmul.f32 %v736, 0.03125
        %v738 = vsub.f32 %v732, %v737
        %v739 = vmul.f32 %v738, %v725
        %v740 = vmul.f32 %v739, %v739
        %741 = vadd.xlane.f32.xlu0 %v740
        %v742 = vpop.xlane.xlu0 %741
        %v743 = vmul.f32 %v742, 0.03125
        %v744 = vadd.f32 %v743, 1e-08
        %v745 = vrsqrt.pop %v744
        %v746 = vmul.f32 %v739, %v745
        %v748 = vlaneseq
        %v749 = vshrl.u32 %v748, 7
        %v750 = vsub.s32 0, %v749
        %v751 = vrot.slane %v733, %v750
        %v753 = vmul.f32 %v751, %v746
        %v755 = vlaneseq
        %v756 = vshrl.u32 %v755, 7
        %v757 = vsub.s32 0, %v756
        %v758 = vrot.slane %v734, %v757
        %v760 = vadd.f32 %v753, %v758
        %v761 = vld [vmem:[%s688] sm:$0xf]
        %v762 = vld [vmem:[%s688 + $0x4] sm:$0xf]
        %v763 = vld [vmem:[%s688 + $0x8] sm:$0xf]
        %v764 = vld [vmem:[%s688 + $0xc] sm:$0xf]
        %v765 = vld [vmem:[%s688 + $0x10] sm:$0xf]
        %v766 = vld [vmem:[%s688 + $0x14] sm:$0xf]
        %v767 = vld [vmem:[%s688 + $0x18] sm:$0xf]
        %v768 = vld [vmem:[%s688 + $0x1c] sm:$0xf]
        %v769 = vld [vmem:[%s688 + $0x20] sm:$0xf]
        %v770 = vld [vmem:[%s688 + $0x24] sm:$0xf]
        %v771 = vld [vmem:[%s688 + $0x28] sm:$0xf]
        %v772 = vld [vmem:[%s688 + $0x2c] sm:$0xf]
        %v773 = vld [vmem:[%s688 + $0x30] sm:$0xf]
        %v774 = vld [vmem:[%s688 + $0x34] sm:$0xf]
        %v775 = vld [vmem:[%s688 + $0x38] sm:$0xf]
        %v776 = vld [vmem:[%s688 + $0x3c] sm:$0xf]
        %v777 = vpack.c.bf16 %v760, %v760
        %v794 = vunpack.c.l.b16 %v761
        %v795 = vunpack.c.l.b16 %v762
        %v796 = vunpack.c.l.b16 %v763
        %v797 = vunpack.c.l.b16 %v764
        %v798 = vunpack.c.l.b16 %v765
        %v799 = vunpack.c.l.b16 %v766
        %v800 = vunpack.c.l.b16 %v767
        %v801 = vunpack.c.l.b16 %v768
        %v802 = vunpack.c.l.b16 %v769
        %v803 = vunpack.c.l.b16 %v770
        %v804 = vunpack.c.l.b16 %v771
        %v805 = vunpack.c.l.b16 %v772
        %v806 = vunpack.c.l.b16 %v773
        %v807 = vunpack.c.l.b16 %v774
        %v808 = vunpack.c.l.b16 %v775
        %v809 = vunpack.c.l.b16 %v776
        %v810 = vpack.c.b16 %v795, %v794
        %v811 = vpack.c.b16 %v797, %v796
        %v812 = vpack.c.b16 %v799, %v798
        %v813 = vpack.c.b16 %v801, %v800
        %v814 = vpack.c.b16 %v803, %v802
        %v815 = vpack.c.b16 %v805, %v804
        %v816 = vpack.c.b16 %v807, %v806
        %v817 = vpack.c.b16 %v809, %v808
        %826 = vmatprep.subr.bf16.mxu0 0
        %827 = vmatpush1.bf16.msra.mxu0 %v817
        %828 = vmatprep.subr.bf16.mxu0 0
        %829 = vmatpush1.bf16.msra.mxu0 %v816
        %830 = vmatprep.subr.bf16.mxu0 0
        %831 = vmatpush1.bf16.msra.mxu0 %v815
        %832 = vmatprep.subr.bf16.mxu0 0
        %833 = vmatpush1.bf16.msra.mxu0 %v814
        %834 = vmatprep.subr.bf16.mxu0 0
        %835 = vmatpush1.bf16.msra.mxu0 %v813
        %836 = vmatprep.subr.bf16.mxu0 0
        %837 = vmatpush1.bf16.msra.mxu0 %v812
        %838 = vmatprep.subr.bf16.mxu0 0
        %839 = vmatpush1.bf16.msra.mxu0 %v811
        %840 = vmatprep.subr.bf16.mxu0 0
        %841 = vmatpush1.bf16.msra.mxu0 %v810
        %842 = vmatprep.subr.bf16.mxu0 0
        %843 = vmatpush2.bf16.msra.mxu0 0
        %844 = vmatprep.subr.bf16.mxu0 0
        %845 = vmatpush2.bf16.msra.mxu0 0
        %846 = vmatprep.subr.bf16.mxu0 0
        %847 = vmatpush2.bf16.msra.mxu0 0
        %848 = vmatprep.subr.bf16.mxu0 0
        %849 = vmatpush2.bf16.msra.mxu0 0
        %850 = vmatprep.subr.bf16.mxu0 0
        %851 = vmatpush2.bf16.msra.mxu0 0
        %852 = vmatprep.subr.bf16.mxu0 0
        %853 = vmatpush2.bf16.msra.mxu0 0
        %854 = vmatprep.subr.bf16.mxu0 0
        %855 = vmatpush2.bf16.msra.mxu0 0
        %856 = vmatprep.subr.bf16.mxu0 0
        %857 = vmatpush2.bf16.msra.mxu0 0
        %858 = vmatprep.mubr.bf16.mxu0 0
        %859 = vmatmul.mubr.bf16.gmra.mxu0 %v777
        %v860 = vpop.f32.mrf.mxu0
        %v861 = vadd.f32 0.0, %v860
        %v862 = vpop.f32.mrf.mxu0
        %v863 = vpop.f32.mrf.mxu0
        %v864 = vpop.f32.mrf.mxu0
        %865 = vdwg.mxu0
        %v866 = vlaneseq
        %v867 = vshrl.u32 %v866, 7
        %vm868 = vcmp.le.s32.totalorder %v722, %v867
        %v869 = vpack.c.bf16 %v861, %v861
        %871 = vrot.lane.b32.xlu0 %v869, 96
        %v872 = vpop.permute.xlu0 %871
        %vm873 = vcmask 64512
        %v875 = vsel %vm873, %v869, 0
        %v878 = vsel %vm873, %v872, 0
        %880 = vmatprep.subr.bf16.mxu0 0
        %881 = vmatpush1.bf16.xpose.msra.mxu0 0
        %882 = vmatprep.subr.bf16.mxu0 0
        %883 = vmatpush1.bf16.xpose.msra.mxu0 0
        %884 = vmatprep.subr.bf16.mxu0 0
        %885 = vmatpush1.bf16.xpose.msra.mxu0 0
        %886 = vmatprep.subr.bf16.mxu0 0
        %887 = vmatpush1.bf16.xpose.msra.mxu0 0
        %888 = vmatprep.subr.bf16.mxu0 0
        %889 = vmatpush1.bf16.xpose.msra.mxu0 0
        %890 = vmatprep.subr.bf16.mxu0 0
        %891 = vmatpush1.bf16.xpose.msra.mxu0 0
        %892 = vmatprep.subr.bf16.mxu0 0
        %893 = vmatpush1.bf16.xpose.msra.mxu0 0
        %894 = vmatprep.subr.bf16.mxu0 0
        %895 = vmatpush1.bf16.xpose.msra.mxu0 %v878
        %896 = vmatprep.subr.bf16.mxu0 0
        %897 = vmatpush2.bf16.xpose.msra.mxu0 0
        %898 = vmatprep.subr.bf16.mxu0 0
        %899 = vmatpush2.bf16.xpose.msra.mxu0 0
        %900 = vmatprep.subr.bf16.mxu0 0
        %901 = vmatpush2.bf16.xpose.msra.mxu0 0
        %902 = vmatprep.subr.bf16.mxu0 0
        %903 = vmatpush2.bf16.xpose.msra.mxu0 0
        %904 = vmatprep.subr.bf16.mxu0 0
        %905 = vmatpush2.bf16.xpose.msra.mxu0 0
        %906 = vmatprep.subr.bf16.mxu0 0
        %907 = vmatpush2.bf16.xpose.msra.mxu0 0
        %908 = vmatprep.subr.bf16.mxu0 0
        %909 = vmatpush2.bf16.xpose.msra.mxu0 0
        %910 = vmatprep.subr.bf16.mxu0 0
        %911 = vmatpush2.bf16.xpose.msra.mxu0 0
        %912 = vmatprep.mubr.bf16.mxu0 0
        %913 = vmatmul.mubr.bf16.gmra.mxu0 %v875
        %v914 = vpop.f32.mrf.mxu0
        %v915 = vadd.f32 0.0, %v914
        %v916 = vpop.f32.mrf.mxu0
        %v917 = vpop.f32.mrf.mxu0
        %v918 = vpop.f32.mrf.mxu0
        %919 = vdwg.mxu0
        %v920 = vmul.f32 %v915, 0.35355338
        %v921 = vsel %vm868, %v920, -1e+30
        %v922 = vsel %vm873, %v921, -inf
        %923 = vmax.xlane.f32.xlu0 %v922
        %v924 = vpop.xlane.xlu0 %923
        %v925 = vsub.f32 %v921, %v924
        %v926 = vmul.f32 %v925, 1.442695
        %v927 = vpow.pop %v926
        %v928 = vsel %vm873, %v927, 0.0
        %929 = vadd.xlane.f32.xlu0 %v928
        %v930 = vpop.xlane.xlu0 %929
        %v931 = vrcp.pop %v930
        %v932 = vmul.f32 %v927, %v931
        %v933 = vpack.c.bf16 %v932, %v932
        %934 = vrot.lane.b32.xlu0 %v869, 64
        %v935 = vpop.permute.xlu0 %934
        %v937 = vsel %vm873, %v933, 0
        %vm939 = vcmask 1043456
        %v941 = vsel %vm939, %v935, 0
        %943 = vmatprep.subr.bf16.mxu0 0
        %944 = vmatpush1.bf16.msra.mxu0 0
        %945 = vmatprep.subr.bf16.mxu0 0
        %946 = vmatpush1.bf16.msra.mxu0 0
        %947 = vmatprep.subr.bf16.mxu0 0
        %948 = vmatpush1.bf16.msra.mxu0 0
        %949 = vmatprep.subr.bf16.mxu0 0
        %950 = vmatpush1.bf16.msra.mxu0 0
        %951 = vmatprep.subr.bf16.mxu0 0
        %952 = vmatpush1.bf16.msra.mxu0 0
        %953 = vmatprep.subr.bf16.mxu0 0
        %954 = vmatpush1.bf16.msra.mxu0 0
        %955 = vmatprep.subr.bf16.mxu0 0
        %956 = vmatpush1.bf16.msra.mxu0 0
        %957 = vmatprep.subr.bf16.mxu0 0
        %958 = vmatpush1.bf16.msra.mxu0 %v941
        %959 = vmatprep.subr.bf16.mxu0 0
        %960 = vmatpush2.bf16.msra.mxu0 0
        %961 = vmatprep.subr.bf16.mxu0 0
        %962 = vmatpush2.bf16.msra.mxu0 0
        %963 = vmatprep.subr.bf16.mxu0 0
        %964 = vmatpush2.bf16.msra.mxu0 0
        %965 = vmatprep.subr.bf16.mxu0 0
        %966 = vmatpush2.bf16.msra.mxu0 0
        %967 = vmatprep.subr.bf16.mxu0 0
        %968 = vmatpush2.bf16.msra.mxu0 0
        %969 = vmatprep.subr.bf16.mxu0 0
        %970 = vmatpush2.bf16.msra.mxu0 0
        %971 = vmatprep.subr.bf16.mxu0 0
        %972 = vmatpush2.bf16.msra.mxu0 0
        %973 = vmatprep.subr.bf16.mxu0 0
        %974 = vmatpush2.bf16.msra.mxu0 0
        %975 = vmatprep.mubr.bf16.mxu0 0
        %976 = vmatmul.mubr.bf16.gmra.mxu0 %v937
        %v977 = vpop.f32.mrf.mxu0
        %v978 = vadd.f32 0.0, %v977
        %v979 = vpop.f32.mrf.mxu0
        %v980 = vpop.f32.mrf.mxu0
        %v981 = vpop.f32.mrf.mxu0
        %982 = vdwg.mxu0
        %983 = vrot.lane.b32.xlu0 %v869, 120
        %v984 = vpop.permute.xlu0 %983
        %985 = vrot.lane.b32.xlu0 %v869, 88
        %v986 = vpop.permute.xlu0 %985
        %v988 = vsel %vm873, %v984, 0
        %v991 = vsel %vm873, %v986, 0
        %993 = vmatprep.subr.bf16.mxu0 0
        %994 = vmatpush1.bf16.xpose.msra.mxu0 0
        %995 = vmatprep.subr.bf16.mxu0 0
        %996 = vmatpush1.bf16.xpose.msra.mxu0 0
        %997 = vmatprep.subr.bf16.mxu0 0
        %998 = vmatpush1.bf16.xpose.msra.mxu0 0
        %999 = vmatprep.subr.bf16.mxu0 0
        %1000 = vmatpush1.bf16.xpose.msra.mxu0 0
        %1001 = vmatprep.subr.bf16.mxu0 0
        %1002 = vmatpush1.bf16.xpose.msra.mxu0 0
        %1003 = vmatprep.subr.bf16.mxu0 0
        %1004 = vmatpush1.bf16.xpose.msra.mxu0 0
        %1005 = vmatprep.subr.bf16.mxu0 0
        %1006 = vmatpush1.bf16.xpose.msra.mxu0 0
        %1007 = vmatprep.subr.bf16.mxu0 0
        %1008 = vmatpush1.bf16.xpose.msra.mxu0 %v991
        %1009 = vmatprep.subr.bf16.mxu0 0
        %1010 = vmatpush2.bf16.xpose.msra.mxu0 0
        %1011 = vmatprep.subr.bf16.mxu0 0
        %1012 = vmatpush2.bf16.xpose.msra.mxu0 0
        %1013 = vmatprep.subr.bf16.mxu0 0
        %1014 = vmatpush2.bf16.xpose.msra.mxu0 0
        %1015 = vmatprep.subr.bf16.mxu0 0
        %1016 = vmatpush2.bf16.xpose.msra.mxu0 0
        %1017 = vmatprep.subr.bf16.mxu0 0
        %1018 = vmatpush2.bf16.xpose.msra.mxu0 0
        %1019 = vmatprep.subr.bf16.mxu0 0
        %1020 = vmatpush2.bf16.xpose.msra.mxu0 0
        %1021 = vmatprep.subr.bf16.mxu0 0
        %1022 = vmatpush2.bf16.xpose.msra.mxu0 0
        %1023 = vmatprep.subr.bf16.mxu0 0
        %1024 = vmatpush2.bf16.xpose.msra.mxu0 0
        %1025 = vmatprep.mubr.bf16.mxu0 0
        %1026 = vmatmul.mubr.bf16.gmra.mxu0 %v988
        %v1027 = vpop.f32.mrf.mxu0
        %v1028 = vadd.f32 0.0, %v1027
        %v1029 = vpop.f32.mrf.mxu0
        %v1030 = vpop.f32.mrf.mxu0
        %v1031 = vpop.f32.mrf.mxu0
        %1032 = vdwg.mxu0
        %v1033 = vmul.f32 %v1028, 0.35355338
        %v1034 = vsel %vm868, %v1033, -1e+30
        %v1035 = vsel %vm873, %v1034, -inf
        %1036 = vmax.xlane.f32.xlu0 %v1035
        %v1037 = vpop.xlane.xlu0 %1036
        %v1038 = vsub.f32 %v1034, %v1037
        %v1039 = vmul.f32 %v1038, 1.442695
        %v1040 = vpow.pop %v1039
        %v1041 = vsel %vm873, %v1040, 0.0
        %1042 = vadd.xlane.f32.xlu0 %v1041
        %v1043 = vpop.xlane.xlu0 %1042
        %v1044 = vrcp.pop %v1043
        %v1045 = vmul.f32 %v1040, %v1044
        %v1046 = vpack.c.bf16 %v1045, %v1045
        %1047 = vrot.lane.b32.xlu0 %v869, 56
        %v1048 = vpop.permute.xlu0 %1047
        %v1050 = vsel %vm873, %v1046, 0
        %v1053 = vsel %vm939, %v1048, 0
        %1055 = vmatprep.subr.bf16.mxu0 0
        %1056 = vmatpush1.bf16.msra.mxu0 0
        %1057 = vmatprep.subr.bf16.mxu0 0
        %1058 = vmatpush1.bf16.msra.mxu0 0
        %1059 = vmatprep.subr.bf16.mxu0 0
        %1060 = vmatpush1.bf16.msra.mxu0 0
        %1061 = vmatprep.subr.bf16.mxu0 0
        %1062 = vmatpush1.bf16.msra.mxu0 0
        %1063 = vmatprep.subr.bf16.mxu0 0
        %1064 = vmatpush1.bf16.msra.mxu0 0
        %1065 = vmatprep.subr.bf16.mxu0 0
        %1066 = vmatpush1.bf16.msra.mxu0 0
        %1067 = vmatprep.subr.bf16.mxu0 0
        %1068 = vmatpush1.bf16.msra.mxu0 0
        %1069 = vmatprep.subr.bf16.mxu0 0
        %1070 = vmatpush1.bf16.msra.mxu0 %v1053
        %1071 = vmatprep.subr.bf16.mxu0 0
        %1072 = vmatpush2.bf16.msra.mxu0 0
        %1073 = vmatprep.subr.bf16.mxu0 0
        %1074 = vmatpush2.bf16.msra.mxu0 0
        %1075 = vmatprep.subr.bf16.mxu0 0
        %1076 = vmatpush2.bf16.msra.mxu0 0
        %1077 = vmatprep.subr.bf16.mxu0 0
        %1078 = vmatpush2.bf16.msra.mxu0 0
        %1079 = vmatprep.subr.bf16.mxu0 0
        %1080 = vmatpush2.bf16.msra.mxu0 0
        %1081 = vmatprep.subr.bf16.mxu0 0
        %1082 = vmatpush2.bf16.msra.mxu0 0
        %1083 = vmatprep.subr.bf16.mxu0 0
        %1084 = vmatpush2.bf16.msra.mxu0 0
        %1085 = vmatprep.subr.bf16.mxu0 0
        %1086 = vmatpush2.bf16.msra.mxu0 0
        %1087 = vmatprep.mubr.bf16.mxu0 0
        %1088 = vmatmul.mubr.bf16.gmra.mxu0 %v1050
        %v1089 = vpop.f32.mrf.mxu0
        %v1090 = vadd.f32 0.0, %v1089
        %v1091 = vpop.f32.mrf.mxu0
        %v1092 = vpop.f32.mrf.mxu0
        %v1093 = vpop.f32.mrf.mxu0
        %1094 = vdwg.mxu0
        %1095 = vrot.lane.b32.xlu0 %v869, 112
        %v1096 = vpop.permute.xlu0 %1095
        %1097 = vrot.lane.b32.xlu0 %v869, 80
        %v1098 = vpop.permute.xlu0 %1097
        %v1100 = vsel %vm873, %v1096, 0
        %v1103 = vsel %vm873, %v1098, 0
        %1105 = vmatprep.subr.bf16.mxu0 0
        %1106 = vmatpush1.bf16.xpose.msra.mxu0 0
        %1107 = vmatprep.subr.bf16.mxu0 0
        %1108 = vmatpush1.bf16.xpose.msra.mxu0 0
        %1109 = vmatprep.subr.bf16.mxu0 0
        %1110 = vmatpush1.bf16.xpose.msra.mxu0 0
        %1111 = vmatprep.subr.bf16.mxu0 0
        %1112 = vmatpush1.bf16.xpose.msra.mxu0 0
        %1113 = vmatprep.subr.bf16.mxu0 0
        %1114 = vmatpush1.bf16.xpose.msra.mxu0 0
        %1115 = vmatprep.subr.bf16.mxu0 0
        %1116 = vmatpush1.bf16.xpose.msra.mxu0 0
        %1117 = vmatprep.subr.bf16.mxu0 0
        %1118 = vmatpush1.bf16.xpose.msra.mxu0 0
        %1119 = vmatprep.subr.bf16.mxu0 0
        %1120 = vmatpush1.bf16.xpose.msra.mxu0 %v1103
        %1121 = vmatprep.subr.bf16.mxu0 0
        %1122 = vmatpush2.bf16.xpose.msra.mxu0 0
        %1123 = vmatprep.subr.bf16.mxu0 0
        %1124 = vmatpush2.bf16.xpose.msra.mxu0 0
        %1125 = vmatprep.subr.bf16.mxu0 0
        %1126 = vmatpush2.bf16.xpose.msra.mxu0 0
        %1127 = vmatprep.subr.bf16.mxu0 0
        %1128 = vmatpush2.bf16.xpose.msra.mxu0 0
        %1129 = vmatprep.subr.bf16.mxu0 0
        %1130 = vmatpush2.bf16.xpose.msra.mxu0 0
        %1131 = vmatprep.subr.bf16.mxu0 0
        %1132 = vmatpush2.bf16.xpose.msra.mxu0 0
        %1133 = vmatprep.subr.bf16.mxu0 0
        %1134 = vmatpush2.bf16.xpose.msra.mxu0 0
        %1135 = vmatprep.subr.bf16.mxu0 0
        %1136 = vmatpush2.bf16.xpose.msra.mxu0 0
        %1137 = vmatprep.mubr.bf16.mxu0 0
        %1138 = vmatmul.mubr.bf16.gmra.mxu0 %v1100
        %v1139 = vpop.f32.mrf.mxu0
        %v1140 = vadd.f32 0.0, %v1139
        %v1141 = vpop.f32.mrf.mxu0
        %v1142 = vpop.f32.mrf.mxu0
        %v1143 = vpop.f32.mrf.mxu0
        %1144 = vdwg.mxu0
        %v1145 = vmul.f32 %v1140, 0.35355338
        %v1146 = vsel %vm868, %v1145, -1e+30
        %v1147 = vsel %vm873, %v1146, -inf
        %1148 = vmax.xlane.f32.xlu0 %v1147
        %v1149 = vpop.xlane.xlu0 %1148
        %v1150 = vsub.f32 %v1146, %v1149
        %v1151 = vmul.f32 %v1150, 1.442695
        %v1152 = vpow.pop %v1151
        %v1153 = vsel %vm873, %v1152, 0.0
        %1154 = vadd.xlane.f32.xlu0 %v1153
        %v1155 = vpop.xlane.xlu0 %1154
        %v1156 = vrcp.pop %v1155
        %v1157 = vmul.f32 %v1152, %v1156
        %v1158 = vpack.c.bf16 %v1157, %v1157
        %1159 = vrot.lane.b32.xlu0 %v869, 48
        %v1160 = vpop.permute.xlu0 %1159
        %v1162 = vsel %vm873, %v1158, 0
        %v1165 = vsel %vm939, %v1160, 0
        %1167 = vmatprep.subr.bf16.mxu0 0
        %1168 = vmatpush1.bf16.msra.mxu0 0
        %1169 = vmatprep.subr.bf16.mxu0 0
        %1170 = vmatpush1.bf16.msra.mxu0 0
        %1171 = vmatprep.subr.bf16.mxu0 0
        %1172 = vmatpush1.bf16.msra.mxu0 0
        %1173 = vmatprep.subr.bf16.mxu0 0
        %1174 = vmatpush1.bf16.msra.mxu0 0
        %1175 = vmatprep.subr.bf16.mxu0 0
        %1176 = vmatpush1.bf16.msra.mxu0 0
        %1177 = vmatprep.subr.bf16.mxu0 0
        %1178 = vmatpush1.bf16.msra.mxu0 0
        %1179 = vmatprep.subr.bf16.mxu0 0
        %1180 = vmatpush1.bf16.msra.mxu0 0
        %1181 = vmatprep.subr.bf16.mxu0 0
        %1182 = vmatpush1.bf16.msra.mxu0 %v1165
        %1183 = vmatprep.subr.bf16.mxu0 0
        %1184 = vmatpush2.bf16.msra.mxu0 0
        %1185 = vmatprep.subr.bf16.mxu0 0
        %1186 = vmatpush2.bf16.msra.mxu0 0
        %1187 = vmatprep.subr.bf16.mxu0 0
        %1188 = vmatpush2.bf16.msra.mxu0 0
        %1189 = vmatprep.subr.bf16.mxu0 0
        %1190 = vmatpush2.bf16.msra.mxu0 0
        %1191 = vmatprep.subr.bf16.mxu0 0
        %1192 = vmatpush2.bf16.msra.mxu0 0
        %1193 = vmatprep.subr.bf16.mxu0 0
        %1194 = vmatpush2.bf16.msra.mxu0 0
        %1195 = vmatprep.subr.bf16.mxu0 0
        %1196 = vmatpush2.bf16.msra.mxu0 0
        %1197 = vmatprep.subr.bf16.mxu0 0
        %1198 = vmatpush2.bf16.msra.mxu0 0
        %1199 = vmatprep.mubr.bf16.mxu0 0
        %1200 = vmatmul.mubr.bf16.gmra.mxu0 %v1162
        %v1201 = vpop.f32.mrf.mxu0
        %v1202 = vadd.f32 0.0, %v1201
        %v1203 = vpop.f32.mrf.mxu0
        %v1204 = vpop.f32.mrf.mxu0
        %v1205 = vpop.f32.mrf.mxu0
        %1206 = vdwg.mxu0
        %1207 = vrot.lane.b32.xlu0 %v869, 104
        %v1208 = vpop.permute.xlu0 %1207
        %1209 = vrot.lane.b32.xlu0 %v869, 72
        %v1210 = vpop.permute.xlu0 %1209
        %v1212 = vsel %vm873, %v1208, 0
        %v1215 = vsel %vm873, %v1210, 0
        %1217 = vmatprep.subr.bf16.mxu0 0
        %1218 = vmatpush1.bf16.xpose.msra.mxu0 0
        %1219 = vmatprep.subr.bf16.mxu0 0
        %1220 = vmatpush1.bf16.xpose.msra.mxu0 0
        %1221 = vmatprep.subr.bf16.mxu0 0
        %1222 = vmatpush1.bf16.xpose.msra.mxu0 0
        %1223 = vmatprep.subr.bf16.mxu0 0
        %1224 = vmatpush1.bf16.xpose.msra.mxu0 0
        %1225 = vmatprep.subr.bf16.mxu0 0
        %1226 = vmatpush1.bf16.xpose.msra.mxu0 0
        %1227 = vmatprep.subr.bf16.mxu0 0
        %1228 = vmatpush1.bf16.xpose.msra.mxu0 0
        %1229 = vmatprep.subr.bf16.mxu0 0
        %1230 = vmatpush1.bf16.xpose.msra.mxu0 0
        %1231 = vmatprep.subr.bf16.mxu0 0
        %1232 = vmatpush1.bf16.xpose.msra.mxu0 %v1215
        %1233 = vmatprep.subr.bf16.mxu0 0
        %1234 = vmatpush2.bf16.xpose.msra.mxu0 0
        %1235 = vmatprep.subr.bf16.mxu0 0
        %1236 = vmatpush2.bf16.xpose.msra.mxu0 0
        %1237 = vmatprep.subr.bf16.mxu0 0
        %1238 = vmatpush2.bf16.xpose.msra.mxu0 0
        %1239 = vmatprep.subr.bf16.mxu0 0
        %1240 = vmatpush2.bf16.xpose.msra.mxu0 0
        %1241 = vmatprep.subr.bf16.mxu0 0
        %1242 = vmatpush2.bf16.xpose.msra.mxu0 0
        %1243 = vmatprep.subr.bf16.mxu0 0
        %1244 = vmatpush2.bf16.xpose.msra.mxu0 0
        %1245 = vmatprep.subr.bf16.mxu0 0
        %1246 = vmatpush2.bf16.xpose.msra.mxu0 0
        %1247 = vmatprep.subr.bf16.mxu0 0
        %1248 = vmatpush2.bf16.xpose.msra.mxu0 0
        %1249 = vmatprep.mubr.bf16.mxu0 0
        %1250 = vmatmul.mubr.bf16.gmra.mxu0 %v1212
        %v1251 = vpop.f32.mrf.mxu0
        %v1252 = vadd.f32 0.0, %v1251
        %v1253 = vpop.f32.mrf.mxu0
        %v1254 = vpop.f32.mrf.mxu0
        %v1255 = vpop.f32.mrf.mxu0
        %1256 = vdwg.mxu0
        %v1257 = vmul.f32 %v1252, 0.35355338
        %v1258 = vsel %vm868, %v1257, -1e+30
        %v1259 = vsel %vm873, %v1258, -inf
        %1260 = vmax.xlane.f32.xlu0 %v1259
        %v1261 = vpop.xlane.xlu0 %1260
        %v1262 = vsub.f32 %v1258, %v1261
        %v1263 = vmul.f32 %v1262, 1.442695
        %v1264 = vpow.pop %v1263
        %v1265 = vsel %vm873, %v1264, 0.0
        %1266 = vadd.xlane.f32.xlu0 %v1265
        %v1267 = vpop.xlane.xlu0 %1266
        %v1268 = vrcp.pop %v1267
        %v1269 = vmul.f32 %v1264, %v1268
        %v1270 = vpack.c.bf16 %v1269, %v1269
        %1271 = vrot.lane.b32.xlu0 %v869, 40
        %v1272 = vpop.permute.xlu0 %1271
        %v1274 = vsel %vm873, %v1270, 0
        %v1277 = vsel %vm939, %v1272, 0
        %1279 = vmatprep.subr.bf16.mxu0 0
        %1280 = vmatpush1.bf16.msra.mxu0 0
        %1281 = vmatprep.subr.bf16.mxu0 0
        %1282 = vmatpush1.bf16.msra.mxu0 0
        %1283 = vmatprep.subr.bf16.mxu0 0
        %1284 = vmatpush1.bf16.msra.mxu0 0
        %1285 = vmatprep.subr.bf16.mxu0 0
        %1286 = vmatpush1.bf16.msra.mxu0 0
        %1287 = vmatprep.subr.bf16.mxu0 0
        %1288 = vmatpush1.bf16.msra.mxu0 0
        %1289 = vmatprep.subr.bf16.mxu0 0
        %1290 = vmatpush1.bf16.msra.mxu0 0
        %1291 = vmatprep.subr.bf16.mxu0 0
        %1292 = vmatpush1.bf16.msra.mxu0 0
        %1293 = vmatprep.subr.bf16.mxu0 0
        %1294 = vmatpush1.bf16.msra.mxu0 %v1277
        %1295 = vmatprep.subr.bf16.mxu0 0
        %1296 = vmatpush2.bf16.msra.mxu0 0
        %1297 = vmatprep.subr.bf16.mxu0 0
        %1298 = vmatpush2.bf16.msra.mxu0 0
        %1299 = vmatprep.subr.bf16.mxu0 0
        %1300 = vmatpush2.bf16.msra.mxu0 0
        %1301 = vmatprep.subr.bf16.mxu0 0
        %1302 = vmatpush2.bf16.msra.mxu0 0
        %1303 = vmatprep.subr.bf16.mxu0 0
        %1304 = vmatpush2.bf16.msra.mxu0 0
        %1305 = vmatprep.subr.bf16.mxu0 0
        %1306 = vmatpush2.bf16.msra.mxu0 0
        %1307 = vmatprep.subr.bf16.mxu0 0
        %1308 = vmatpush2.bf16.msra.mxu0 0
        %1309 = vmatprep.subr.bf16.mxu0 0
        %1310 = vmatpush2.bf16.msra.mxu0 0
        %1311 = vmatprep.mubr.bf16.mxu0 0
        %1312 = vmatmul.mubr.bf16.gmra.mxu0 %v1274
        %v1313 = vpop.f32.mrf.mxu0
        %v1314 = vadd.f32 0.0, %v1313
        %v1315 = vpop.f32.mrf.mxu0
        %v1316 = vpop.f32.mrf.mxu0
        %v1317 = vpop.f32.mrf.mxu0
        %1318 = vdwg.mxu0
        %1320 = vrot.lane.b32.xlu0 %v1090, 8
        %v1321 = vpop.permute.xlu0 %1320
        %1324 = vrot.lane.b32.xlu0 %v1202, 16
        %v1325 = vpop.permute.xlu0 %1324
        %1328 = vrot.lane.b32.xlu0 %v1314, 24
        %v1329 = vpop.permute.xlu0 %1328
        %v1331 = vsel %vm873, %v978, %v1321
        %vm1332 = vcmask 130048
        %v1333 = vsel %vm1332, %v1331, %v1325
        %vm1334 = vcmask 195584
        %v1335 = vsel %vm1334, %v1333, %v1329
        %v1336 = vld [vmem:[%s693] sm:$0xf]
        %v1337 = vld [vmem:[%s693 + $0x4] sm:$0xf]
        %v1338 = vld [vmem:[%s693 + $0x8] sm:$0xf]
        %v1339 = vld [vmem:[%s693 + $0xc] sm:$0xf]
        %v1340 = vpack.c.bf16 %v1335, %v1335
        %v1341 = vld [vmem:[%s696] sm:$0x1]
        %v1343 = vlaneseq
        %v1344 = vshrl.u32 %v1343, 7
        %v1345 = vsub.s32 0, %v1344
        %v1346 = vrot.slane %v1341, %v1345
        %v1352 = vunpack.c.l.b16 %v1336
        %v1353 = vunpack.c.l.b16 %v1337
        %v1354 = vunpack.c.l.b16 %v1338
        %v1355 = vunpack.c.l.b16 %v1339
        %v1356 = vpack.c.b16 %v1353, %v1352
        %v1357 = vpack.c.b16 %v1355, %v1354
        %vm1360 = vcmask 261120
        %v1362 = vsel %vm1360, %v1340, 0
        %1364 = vmatprep.subr.bf16.mxu0 0
        %1365 = vmatpush1.bf16.msra.mxu0 0
        %1366 = vmatprep.subr.bf16.mxu0 0
        %1367 = vmatpush1.bf16.msra.mxu0 0
        %1368 = vmatprep.subr.bf16.mxu0 0
        %1369 = vmatpush1.bf16.msra.mxu0 0
        %1370 = vmatprep.subr.bf16.mxu0 0
        %1371 = vmatpush1.bf16.msra.mxu0 0
        %1372 = vmatprep.subr.bf16.mxu0 0
        %1373 = vmatpush1.bf16.msra.mxu0 0
        %1374 = vmatprep.subr.bf16.mxu0 0
        %1375 = vmatpush1.bf16.msra.mxu0 0
        %1376 = vmatprep.subr.bf16.mxu0 0
        %1377 = vmatpush1.bf16.msra.mxu0 %v1357
        %1378 = vmatprep.subr.bf16.mxu0 0
        %1379 = vmatpush1.bf16.msra.mxu0 %v1356
        %1380 = vmatprep.subr.bf16.mxu0 0
        %1381 = vmatpush2.bf16.msra.mxu0 0
        %1382 = vmatprep.subr.bf16.mxu0 0
        %1383 = vmatpush2.bf16.msra.mxu0 0
        %1384 = vmatprep.subr.bf16.mxu0 0
        %1385 = vmatpush2.bf16.msra.mxu0 0
        %1386 = vmatprep.subr.bf16.mxu0 0
        %1387 = vmatpush2.bf16.msra.mxu0 0
        %1388 = vmatprep.subr.bf16.mxu0 0
        %1389 = vmatpush2.bf16.msra.mxu0 0
        %1390 = vmatprep.subr.bf16.mxu0 0
        %1391 = vmatpush2.bf16.msra.mxu0 0
        %1392 = vmatprep.subr.bf16.mxu0 0
        %1393 = vmatpush2.bf16.msra.mxu0 0
        %1394 = vmatprep.subr.bf16.mxu0 0
        %1395 = vmatpush2.bf16.msra.mxu0 0
        %1396 = vmatprep.mubr.bf16.mxu0 0
        %1397 = vmatmul.mubr.bf16.gmra.mxu0 %v1362
        %v1398 = vpop.f32.mrf.mxu0
        %v1399 = vadd.f32 %v1346, %v1398
        %v1400 = vpop.f32.mrf.mxu0
        %v1401 = vpop.f32.mrf.mxu0
        %v1402 = vpop.f32.mrf.mxu0
        %1403 = vdwg.mxu0
        %v1404 = vadd.f32 %v732, %v1399
        %v1405 = vld [vmem:[%s716] sm:$0x1]
        %v1406 = vld [vmem:[%s719] sm:$0x1]
        %1407 = vadd.xlane.f32.xlu0 %v1404
        %v1408 = vpop.xlane.xlu0 %1407
        %v1409 = vmul.f32 %v1408, 0.03125
        %v1410 = vsub.f32 %v1404, %v1409
        %v1411 = vmul.f32 %v1410, %v725
        %v1412 = vmul.f32 %v1411, %v1411
        %1413 = vadd.xlane.f32.xlu0 %v1412
        %v1414 = vpop.xlane.xlu0 %1413
        %v1415 = vmul.f32 %v1414, 0.03125
        %v1416 = vadd.f32 %v1415, 1e-08
        %v1417 = vrsqrt.pop %v1416
        %v1418 = vmul.f32 %v1411, %v1417
        %v1420 = vlaneseq
        %v1421 = vshrl.u32 %v1420, 7
        %v1422 = vsub.s32 0, %v1421
        %v1423 = vrot.slane %v1405, %v1422
        %v1425 = vmul.f32 %v1423, %v1418
        %v1427 = vlaneseq
        %v1428 = vshrl.u32 %v1427, 7
        %v1429 = vsub.s32 0, %v1428
        %v1430 = vrot.slane %v1406, %v1429
        %v1432 = vadd.f32 %v1425, %v1430
        %v1433 = vld [vmem:[%s701] sm:$0xf]
        %v1434 = vld [vmem:[%s701 + $0x4] sm:$0xf]
        %v1435 = vld [vmem:[%s701 + $0x8] sm:$0xf]
        %v1436 = vld [vmem:[%s701 + $0xc] sm:$0xf]
        %v1437 = vld [vmem:[%s701 + $0x10] sm:$0xf]
        %v1438 = vld [vmem:[%s701 + $0x14] sm:$0xf]
        %v1439 = vld [vmem:[%s701 + $0x18] sm:$0xf]
        %v1440 = vld [vmem:[%s701 + $0x1c] sm:$0xf]
        %v1441 = vld [vmem:[%s701 + $0x20] sm:$0xf]
        %v1442 = vld [vmem:[%s701 + $0x24] sm:$0xf]
        %v1443 = vld [vmem:[%s701 + $0x28] sm:$0xf]
        %v1444 = vld [vmem:[%s701 + $0x2c] sm:$0xf]
        %v1445 = vld [vmem:[%s701 + $0x30] sm:$0xf]
        %v1446 = vld [vmem:[%s701 + $0x34] sm:$0xf]
        %v1447 = vld [vmem:[%s701 + $0x38] sm:$0xf]
        %v1448 = vld [vmem:[%s701 + $0x3c] sm:$0xf]
        %v1449 = vpack.c.bf16 %v1432, %v1432
        %v1450 = vld [vmem:[%s704] sm:$0x1]
        %v1452 = vlaneseq
        %v1453 = vshrl.u32 %v1452, 7
        %v1454 = vsub.s32 0, %v1453
        %v1455 = vrot.slane %v1450, %v1454
        %v1473 = vunpack.c.l.b16 %v1433
        %v1474 = vunpack.c.l.b16 %v1434
        %v1475 = vunpack.c.l.b16 %v1435
        %v1476 = vunpack.c.l.b16 %v1436
        %v1477 = vunpack.c.l.b16 %v1437
        %v1478 = vunpack.c.l.b16 %v1438
        %v1479 = vunpack.c.l.b16 %v1439
        %v1480 = vunpack.c.l.b16 %v1440
        %v1481 = vunpack.c.l.b16 %v1441
        %v1482 = vunpack.c.l.b16 %v1442
        %v1483 = vunpack.c.l.b16 %v1443
        %v1484 = vunpack.c.l.b16 %v1444
        %v1485 = vunpack.c.l.b16 %v1445
        %v1486 = vunpack.c.l.b16 %v1446
        %v1487 = vunpack.c.l.b16 %v1447
        %v1488 = vunpack.c.l.b16 %v1448
        %v1489 = vpack.c.b16 %v1474, %v1473
        %v1490 = vpack.c.b16 %v1476, %v1475
        %v1491 = vpack.c.b16 %v1478, %v1477
        %v1492 = vpack.c.b16 %v1480, %v1479
        %v1493 = vpack.c.b16 %v1482, %v1481
        %v1494 = vpack.c.b16 %v1484, %v1483
        %v1495 = vpack.c.b16 %v1486, %v1485
        %v1496 = vpack.c.b16 %v1488, %v1487
        %1505 = vmatprep.subr.bf16.mxu0 0
        %1506 = vmatpush1.bf16.msra.mxu0 %v1496
        %1507 = vmatprep.subr.bf16.mxu0 0
        %1508 = vmatpush1.bf16.msra.mxu0 %v1495
        %1509 = vmatprep.subr.bf16.mxu0 0
        %1510 = vmatpush1.bf16.msra.mxu0 %v1494
        %1511 = vmatprep.subr.bf16.mxu0 0
        %1512 = vmatpush1.bf16.msra.mxu0 %v1493
        %1513 = vmatprep.subr.bf16.mxu0 0
        %1514 = vmatpush1.bf16.msra.mxu0 %v1492
        %1515 = vmatprep.subr.bf16.mxu0 0
        %1516 = vmatpush1.bf16.msra.mxu0 %v1491
        %1517 = vmatprep.subr.bf16.mxu0 0
        %1518 = vmatpush1.bf16.msra.mxu0 %v1490
        %1519 = vmatprep.subr.bf16.mxu0 0
        %1520 = vmatpush1.bf16.msra.mxu0 %v1489
        %1521 = vmatprep.subr.bf16.mxu0 0
        %1522 = vmatpush2.bf16.msra.mxu0 0
        %1523 = vmatprep.subr.bf16.mxu0 0
        %1524 = vmatpush2.bf16.msra.mxu0 0
        %1525 = vmatprep.subr.bf16.mxu0 0
        %1526 = vmatpush2.bf16.msra.mxu0 0
        %1527 = vmatprep.subr.bf16.mxu0 0
        %1528 = vmatpush2.bf16.msra.mxu0 0
        %1529 = vmatprep.subr.bf16.mxu0 0
        %1530 = vmatpush2.bf16.msra.mxu0 0
        %1531 = vmatprep.subr.bf16.mxu0 0
        %1532 = vmatpush2.bf16.msra.mxu0 0
        %1533 = vmatprep.subr.bf16.mxu0 0
        %1534 = vmatpush2.bf16.msra.mxu0 0
        %1535 = vmatprep.subr.bf16.mxu0 0
        %1536 = vmatpush2.bf16.msra.mxu0 0
        %1537 = vmatprep.mubr.bf16.mxu0 0
        %1538 = vmatmul.mubr.bf16.gmra.mxu0 %v1449
        %v1539 = vpop.f32.mrf.mxu0
        %v1540 = vadd.f32 %v1455, %v1539
        %v1541 = vpop.f32.mrf.mxu0
        %v1542 = vpop.f32.mrf.mxu0
        %v1543 = vpop.f32.mrf.mxu0
        %1544 = vdwg.mxu0
        %v1545 = vmul.f32 %v1540, 0.5
        %v1546 = vmul.f32 %v1540, %v1540
        %v1547 = vmul.f32 %v1540, %v1546
        %v1548 = vmul.f32 %v1547, 0.044715
        %v1549 = vadd.f32 %v1540, %v1548
        %v1550 = vmul.f32 %v1549, 0.7978846
        %v1551 = vtanh.pop %v1550
        %v1552 = vadd.f32 %v1551, 1.0
        %v1553 = vmul.f32 %v1545, %v1552
        %v1554 = vld [vmem:[%s596] sm:$0xf]
        %v1555 = vld [vmem:[%s596 + $0x4] sm:$0xf]
        %v1556 = vld [vmem:[%s596 + $0x8] sm:$0xf]
        %v1557 = vld [vmem:[%s596 + $0xc] sm:$0xf]
        %v1558 = vld [vmem:[%s596 + $0x10] sm:$0xf]
        %v1559 = vld [vmem:[%s596 + $0x14] sm:$0xf]
        %v1560 = vld [vmem:[%s596 + $0x18] sm:$0xf]
        %v1561 = vld [vmem:[%s596 + $0x1c] sm:$0xf]
        %v1562 = vld [vmem:[%s596 + $0x20] sm:$0xf]
        %v1563 = vld [vmem:[%s596 + $0x24] sm:$0xf]
        %v1564 = vld [vmem:[%s596 + $0x28] sm:$0xf]
        %v1565 = vld [vmem:[%s596 + $0x2c] sm:$0xf]
        %v1566 = vld [vmem:[%s596 + $0x30] sm:$0xf]
        %v1567 = vld [vmem:[%s596 + $0x34] sm:$0xf]
        %v1568 = vld [vmem:[%s596 + $0x38] sm:$0xf]
        %v1569 = vld [vmem:[%s596 + $0x3c] sm:$0xf]
        %v1570 = vpack.c.bf16 %v1553, %v1553
        %v1587 = vunpack.c.l.b16 %v1554
        %v1588 = vunpack.c.l.b16 %v1555
        %v1589 = vunpack.c.l.b16 %v1556
        %v1590 = vunpack.c.l.b16 %v1557
        %v1591 = vunpack.c.l.b16 %v1558
        %v1592 = vunpack.c.l.b16 %v1559
        %v1593 = vunpack.c.l.b16 %v1560
        %v1594 = vunpack.c.l.b16 %v1561
        %v1595 = vunpack.c.l.b16 %v1562
        %v1596 = vunpack.c.l.b16 %v1563
        %v1597 = vunpack.c.l.b16 %v1564
        %v1598 = vunpack.c.l.b16 %v1565
        %v1599 = vunpack.c.l.b16 %v1566
        %v1600 = vunpack.c.l.b16 %v1567
        %v1601 = vunpack.c.l.b16 %v1568
        %v1602 = vunpack.c.l.b16 %v1569
        %v1603 = vpack.c.b16 %v1588, %v1587
        %v1604 = vpack.c.b16 %v1590, %v1589
        %v1605 = vpack.c.b16 %v1592, %v1591
        %v1606 = vpack.c.b16 %v1594, %v1593
        %v1607 = vpack.c.b16 %v1596, %v1595
        %v1608 = vpack.c.b16 %v1598, %v1597
        %v1609 = vpack.c.b16 %v1600, %v1599
        %v1610 = vpack.c.b16 %v1602, %v1601
        %1619 = vmatprep.subr.bf16.mxu0 0
        %1620 = vmatpush1.bf16.msra.mxu0 %v1610
        %1621 = vmatprep.subr.bf16.mxu0 0
        %1622 = vmatpush1.bf16.msra.mxu0 %v1609
        %1623 = vmatprep.subr.bf16.mxu0 0
        %1624 = vmatpush1.bf16.msra.mxu0 %v1608
        %1625 = vmatprep.subr.bf16.mxu0 0
        %1626 = vmatpush1.bf16.msra.mxu0 %v1607
        %1627 = vmatprep.subr.bf16.mxu0 0
        %1628 = vmatpush1.bf16.msra.mxu0 %v1606
        %1629 = vmatprep.subr.bf16.mxu0 0
        %1630 = vmatpush1.bf16.msra.mxu0 %v1605
        %1631 = vmatprep.subr.bf16.mxu0 0
        %1632 = vmatpush1.bf16.msra.mxu0 %v1604
        %1633 = vmatprep.subr.bf16.mxu0 0
        %1634 = vmatpush1.bf16.msra.mxu0 %v1603
        %1635 = vmatprep.subr.bf16.mxu0 0
        %1636 = vmatpush2.bf16.msra.mxu0 0
        %1637 = vmatprep.subr.bf16.mxu0 0
        %1638 = vmatpush2.bf16.msra.mxu0 0
        %1639 = vmatprep.subr.bf16.mxu0 0
        %1640 = vmatpush2.bf16.msra.mxu0 0
        %1641 = vmatprep.subr.bf16.mxu0 0
        %1642 = vmatpush2.bf16.msra.mxu0 0
        %1643 = vmatprep.subr.bf16.mxu0 0
        %1644 = vmatpush2.bf16.msra.mxu0 0
        %1645 = vmatprep.subr.bf16.mxu0 0
        %1646 = vmatpush2.bf16.msra.mxu0 0
        %1647 = vmatprep.subr.bf16.mxu0 0
        %1648 = vmatpush2.bf16.msra.mxu0 0
        %1649 = vmatprep.subr.bf16.mxu0 0
        %1650 = vmatpush2.bf16.msra.mxu0 0
        %1651 = vmatprep.mubr.bf16.mxu0 0
        %1652 = vmatmul.mubr.bf16.gmra.mxu0 %v1570
        %v1653 = vpop.f32.mrf.mxu0
        %v1654 = vadd.f32 0.0, %v1653
        %v1655 = vpop.f32.mrf.mxu0
        %v1656 = vpop.f32.mrf.mxu0
        %v1657 = vpop.f32.mrf.mxu0
        %1658 = vdwg.mxu0
        %v1659 = vadd.f32 %v1404, %v1654
        %v1660 = vld [vmem:[%s707] sm:$0x1]
        %v1662 = vlaneseq
        %v1663 = vshrl.u32 %v1662, 7
        %v1664 = vsub.s32 0, %v1663
        %v1665 = vrot.slane %v1660, %v1664
        %v1667 = vadd.f32 %v1659, %v1665
        %1668 = vst [vmem:[#allocation2] sm:$0xff] %v1667
        %p1669 = scmp.eq.s32.totalorder %s40, 1
        // Predicated region
        $region93: #{tpu_custom_call.1} parent=79 // pred_check
          %p1670 = pneg %p1669
        $region94: #{tpu_custom_call.1} parent=79 // pred_check_branch
          %1672 = sbr.rel (%p1670) target = $region96
        $region95: #{tpu_custom_call.1} parent=79 // pred_region
          %v1673 = vld [vmem:[%s12] sm:$0x1]
          %v1674 = vld [vmem:[%s13] sm:$0x1]
          %1675 = vadd.xlane.f32.xlu0 %v1667
          %v1676 = vpop.xlane.xlu0 %1675
          %v1677 = vmul.f32 %v1676, 0.03125
          %v1678 = vsub.f32 %v1667, %v1677
          %v1679 = vmul.f32 %v1678, %v725
          %v1680 = vmul.f32 %v1679, %v1679
          %1681 = vadd.xlane.f32.xlu0 %v1680
          %v1682 = vpop.xlane.xlu0 %1681
          %v1683 = vmul.f32 %v1682, 0.03125
          %v1684 = vadd.f32 %v1683, 1e-08
          %v1685 = vrsqrt.pop %v1684
          %v1686 = vmul.f32 %v1679, %v1685
          %v1688 = vlaneseq
          %v1689 = vshrl.u32 %v1688, 7
          %v1690 = vsub.s32 0, %v1689
          %v1691 = vrot.slane %v1673, %v1690
          %v1693 = vmul.f32 %v1691, %v1686
          %v1695 = vlaneseq
          %v1696 = vshrl.u32 %v1695, 7
          %v1697 = vsub.s32 0, %v1696
          %v1698 = vrot.slane %v1674, %v1697
          %v1700 = vadd.f32 %v1693, %v1698
          %v1701 = vld [vmem:[%s14] sm:$0xf]
          %v1702 = vld [vmem:[%s14 + $0x4] sm:$0xf]
          %v1703 = vld [vmem:[%s14 + $0x8] sm:$0xf]
          %v1704 = vld [vmem:[%s14 + $0xc] sm:$0xf]
          %v1705 = vld [vmem:[%s14 + $0x10] sm:$0xf]
          %v1706 = vld [vmem:[%s14 + $0x14] sm:$0xf]
          %v1707 = vld [vmem:[%s14 + $0x18] sm:$0xf]
          %v1708 = vld [vmem:[%s14 + $0x1c] sm:$0xf]
          %v1709 = vld [vmem:[%s14 + $0x20] sm:$0xf]
          %v1710 = vld [vmem:[%s14 + $0x24] sm:$0xf]
          %v1711 = vld [vmem:[%s14 + $0x28] sm:$0xf]
          %v1712 = vld [vmem:[%s14 + $0x2c] sm:$0xf]
          %v1713 = vld [vmem:[%s14 + $0x30] sm:$0xf]
          %v1714 = vld [vmem:[%s14 + $0x34] sm:$0xf]
          %v1715 = vld [vmem:[%s14 + $0x38] sm:$0xf]
          %v1716 = vld [vmem:[%s14 + $0x3c] sm:$0xf]
          %v1717 = vpack.c.bf16 %v1700, %v1700
          %v1734 = vunpack.c.l.b16 %v1701
          %v1735 = vunpack.c.l.b16 %v1702
          %v1736 = vunpack.c.l.b16 %v1703
          %v1737 = vunpack.c.l.b16 %v1704
          %v1738 = vunpack.c.l.b16 %v1705
          %v1739 = vunpack.c.l.b16 %v1706
          %v1740 = vunpack.c.l.b16 %v1707
          %v1741 = vunpack.c.l.b16 %v1708
          %v1742 = vunpack.c.l.b16 %v1709
          %v1743 = vunpack.c.l.b16 %v1710
          %v1744 = vunpack.c.l.b16 %v1711
          %v1745 = vunpack.c.l.b16 %v1712
          %v1746 = vunpack.c.l.b16 %v1713
          %v1747 = vunpack.c.l.b16 %v1714
          %v1748 = vunpack.c.l.b16 %v1715
          %v1749 = vunpack.c.l.b16 %v1716
          %v1750 = vpack.c.b16 %v1735, %v1734
          %v1751 = vpack.c.b16 %v1737, %v1736
          %v1752 = vpack.c.b16 %v1739, %v1738
          %v1753 = vpack.c.b16 %v1741, %v1740
          %v1754 = vpack.c.b16 %v1743, %v1742
          %v1755 = vpack.c.b16 %v1745, %v1744
          %v1756 = vpack.c.b16 %v1747, %v1746
          %v1757 = vpack.c.b16 %v1749, %v1748
          %1766 = vmatprep.subr.bf16.mxu0 0
          %1767 = vmatpush1.bf16.msra.mxu0 %v1757
          %1768 = vmatprep.subr.bf16.mxu0 0
          %1769 = vmatpush1.bf16.msra.mxu0 %v1756
          %1770 = vmatprep.subr.bf16.mxu0 0
          %1771 = vmatpush1.bf16.msra.mxu0 %v1755
          %1772 = vmatprep.subr.bf16.mxu0 0
          %1773 = vmatpush1.bf16.msra.mxu0 %v1754
          %1774 = vmatprep.subr.bf16.mxu0 0
          %1775 = vmatpush1.bf16.msra.mxu0 %v1753
          %1776 = vmatprep.subr.bf16.mxu0 0
          %1777 = vmatpush1.bf16.msra.mxu0 %v1752
          %1778 = vmatprep.subr.bf16.mxu0 0
          %1779 = vmatpush1.bf16.msra.mxu0 %v1751
          %1780 = vmatprep.subr.bf16.mxu0 0
          %1781 = vmatpush1.bf16.msra.mxu0 %v1750
          %1782 = vmatprep.subr.bf16.mxu0 0
          %1783 = vmatpush2.bf16.msra.mxu0 0
          %1784 = vmatprep.subr.bf16.mxu0 0
          %1785 = vmatpush2.bf16.msra.mxu0 0
          %1786 = vmatprep.subr.bf16.mxu0 0
          %1787 = vmatpush2.bf16.msra.mxu0 0
          %1788 = vmatprep.subr.bf16.mxu0 0
          %1789 = vmatpush2.bf16.msra.mxu0 0
          %1790 = vmatprep.subr.bf16.mxu0 0
          %1791 = vmatpush2.bf16.msra.mxu0 0
          %1792 = vmatprep.subr.bf16.mxu0 0
          %1793 = vmatpush2.bf16.msra.mxu0 0
          %1794 = vmatprep.subr.bf16.mxu0 0
          %1795 = vmatpush2.bf16.msra.mxu0 0
          %1796 = vmatprep.subr.bf16.mxu0 0
          %1797 = vmatpush2.bf16.msra.mxu0 0
          %1798 = vmatprep.mubr.bf16.mxu0 0
          %1799 = vmatmul.mubr.bf16.gmra.mxu0 %v1717
          %v1800 = vpop.f32.mrf.mxu0
          %v1801 = vadd.f32 0.0, %v1800
          %v1802 = vpop.f32.mrf.mxu0
          %v1803 = vpop.f32.mrf.mxu0
          %v1804 = vpop.f32.mrf.mxu0
          %1805 = vdwg.mxu0
          %1806 = vst [vmem:[%s683] sm:$0xff] %v1801
        $region96: #{tpu_custom_call.1} parent=79 // pred_fallthru
          _
        %s1807 = sand.u32 %s430, 1
        %s1808 = scalar_lea.sflag [#allocation5], %s1807
        %s1809 = sand.u32 %s430, 1
        %s1810 = smul.addr %s1809, 8
        %s1811 = scalar_lea.vmem [#allocation8], %s1810
        // Predicated region
        $region97: #{tpu_custom_call.1} parent=79 // pred_check
          %p1812 = pneg %p440
        $region98: #{tpu_custom_call.1} parent=79 // pred_check_branch
          %1814 = sbr.rel (%p1812) target = $region100
        $region99: #{tpu_custom_call.1} parent=79 // pred_region
          %s1816 = ssub.s32 128, 128
          %1817 = vsyncadd %s1808, %s1816
          %s1818 = smul.addr %s39, 128
          %s1819 = scalar_lea.hbm %s15, %s1818
          %s1821 = sshll.u32 %s1811, 4
          %s1822 = int_to_ptr.vmem [resolvable:$true] %s1821
          %1824 = dma.vmem_to_hbm [thread:$0]  %s1822, 128, %s1819, %s1808
        $region100: #{tpu_custom_call.1} parent=79 // pred_fallthru
          _
      $region80: #{tpu_custom_call.1} parent=5 // pred_fallthru
        _
      %p1825 = scmp.le.s32.totalorder 2, %s30
      // Predicated region
      $region101: #{tpu_custom_call.1} parent=5 // pred_check
        %p1826 = pneg %p1825
      $region102: #{tpu_custom_call.1} parent=5 // pred_check_branch
        %1828 = sbr.rel (%p1826) target = $region104
      $region103: #{tpu_custom_call.1} parent=5 // pred_region
        %s1829 = ssub.s32 %s30, 2
        // Predicated region
        $region105: #{tpu_custom_call.1} parent=103 // pred_check
          %p1830 = pneg %p446
        $region106: #{tpu_custom_call.1} parent=103 // pred_check_branch
          %1832 = sbr.rel (%p1830) target = $region108
        $region107: #{tpu_custom_call.1} parent=103 // pred_region
          %s1833 = sand.u32 %s431, 1
          %s1834 = scalar_lea.sflag [#allocation5], %s1833
          %s1835 = sand.u32 %s431, 1
          %s1836 = smul.addr %s1835, 8
          %s1837 = scalar_lea.vmem [#allocation8], %s1836
          %1838 = dma.done %s1834, 128
        $region108: #{tpu_custom_call.1} parent=103 // pred_fallthru
          _
      $region104: #{tpu_custom_call.1} parent=5 // pred_fallthru
        _
    $region6: #{tpu_custom_call.1} parent=1 // loop_footer
      %s34 = sadd.s32 1, %s30
    $region7: #{tpu_custom_call.1} parent=1 // loop_footer_branch
      %29 = sbr.rel target = $region3
    $region8: #{tpu_custom_call.1} parent=1 // loop_exit
      _
    %1839 = vsyncpa [#allocation4], 1
    %s1840 = scalar_lea.sflag [#allocation4], 1
    %1841 = vsyncpa %s1840, 1
    %1842 = vsyncpa [#allocation7], 1
    %s1843 = scalar_lea.sflag [#allocation7], 1
    %1844 = vsyncpa %s1843, 1
    %1845 = vsyncpa [#allocation5], 1
    %s1846 = scalar_lea.sflag [#allocation5], 1
    %1847 = vsyncpa %s1846, 1

</llo_original>
